<compile_context>
chip_gen: v6e
topology: v6e:2x2x1
jax: 0.10.0
libtpu: 0.0.40
codegen_flags: <defaults>
</compile_context>

<pallas_src>
import math

import jax
import jax.numpy as jnp
from jax.experimental import pallas as pl
from jax.experimental.pallas import tpu as pltpu


# -----------------------------------------------------------------------------
# Pallas kernel
# -----------------------------------------------------------------------------
def _make_neumf_kernel(num_layer_mlp):
    """Builds a kernel closed over the (static) number of MLP layers."""

    def kernel(*refs):
        # refs layout:
        #   0..3                    : eu_gmf, ei_gmf, eu_mlp, ei_mlp   (tb, F)
        #   4, 5, 6                 : W0_user (F,out0), W0_item (F,out0), b0 (1,out0)
        #   next 2*(L-1)            : (W_i, b_i) for MLP layers 1..L-1
        #   then                    : wp_gmf (1, F), wp_mlp (1, F), bp (1, 1)
        #   last                    : out_ref (tb, 1)
        eu_g, ei_g, eu_m, ei_m = refs[0], refs[1], refs[2], refs[3]
        w0u_ref, w0i_ref, b0_ref = refs[4], refs[5], refs[6]
        rest = refs[7:7 + 2 * (num_layer_mlp - 1)]
        wpg_ref = refs[7 + 2 * (num_layer_mlp - 1)]
        wpm_ref = refs[8 + 2 * (num_layer_mlp - 1)]
        bp_ref = refs[9 + 2 * (num_layer_mlp - 1)]
        out_ref = refs[10 + 2 * (num_layer_mlp - 1)]

        # --- GMF branch: elementwise product, kept in f32 on the VPU ---------
        gmf = eu_g[...].astype(jnp.float32) * ei_g[...].astype(jnp.float32)

        # --- MLP branch -------------------------------------------------------
        # First layer with split weights: avoids the lane-axis concat of the
        # user / item MLP embeddings (two MXU pushes accumulating in f32).
        x = (jnp.dot(eu_m[...], w0u_ref[...], preferred_element_type=jnp.float32)
             + jnp.dot(ei_m[...], w0i_ref[...], preferred_element_type=jnp.float32)
             + b0_ref[...])
        x = jnp.maximum(x, 0.0)                              # ReLU (f32)

        for i in range(num_layer_mlp - 1):
            w = rest[2 * i]                                  # (in_i, out_i), bf16
            b = rest[2 * i + 1]                              # (1, out_i),  f32
            # nn.Dropout is identity in eval mode (no-op here).
            x = jnp.dot(x.astype(w.dtype), w[...],
                        preferred_element_type=jnp.float32) + b[...]
            x = jnp.maximum(x, 0.0)

        # --- fusion + prediction: VPU multiply + XLU lane reduction ----------
        # (replaces the N=1 MXU matvec and the GMF/MLP lane-axis concat)
        pred = (jnp.sum(gmf * wpg_ref[...], axis=-1, keepdims=True)
                + jnp.sum(x * wpm_ref[...], axis=-1, keepdims=True)
                + bp_ref[...])
        out_ref[...] = pred                                  # (tb, 1)

    return kernel


# -----------------------------------------------------------------------------
# Wrapper
# -----------------------------------------------------------------------------
def neumf_forward(params, user, item, *, tb=256, use_bf16=True):
    """NeuMF forward pass. Returns prediction of shape (B,)."""
    f32 = jnp.float32
    emb_dt = jnp.bfloat16 if use_bf16 else f32

    # Embedding gathers (memory glue, done in plain JAX); streamed as bf16.
    eu_g = jnp.take(params["embed_user_GMF"], user, axis=0).astype(emb_dt)
    ei_g = jnp.take(params["embed_item_GMF"], item, axis=0).astype(emb_dt)
    eu_m = jnp.take(params["embed_user_MLP"], user, axis=0).astype(emb_dt)
    ei_m = jnp.take(params["embed_item_MLP"], item, axis=0).astype(emb_dt)

    B, F = eu_g.shape
    tb = min(tb, B)
    assert B % tb == 0, "batch must be a multiple of the batch tile"
    num_layer_mlp = len(params["mlp"])
    assert num_layer_mlp >= 1

    # --- batch-tiled embedding streams ---------------------------------------
    args = [eu_g, ei_g, eu_m, ei_m]
    in_specs = [pl.BlockSpec((tb, F), lambda i: (i, 0)) for _ in range(4)]

    # --- first MLP layer, weight split along the input (lane) axis -----------
    w0, b0 = params["mlp"][0]                     # w0: (2F, out0)
    w0_u = w0[:F, :].astype(emb_dt)
    w0_i = w0[F:, :].astype(emb_dt)
    b0_2d = b0.reshape(1, -1).astype(f32)
    args += [w0_u, w0_i, b0_2d]
    in_specs += [
        pl.BlockSpec(w0_u.shape, lambda i: (0, 0)),
        pl.BlockSpec(w0_i.shape, lambda i: (0, 0)),
        pl.BlockSpec(b0_2d.shape, lambda i: (0, 0)),
    ]

    # --- remaining MLP layers (full-block, grid-invariant) -------------------
    for w, b in params["mlp"][1:]:
        wq = w.astype(emb_dt)
        b2d = b.reshape(1, -1).astype(f32)
        args += [wq, b2d]
        in_specs += [
            pl.BlockSpec(wq.shape, lambda i: (0, 0)),
            pl.BlockSpec(b2d.shape, lambda i: (0, 0)),
        ]

    # --- predict layer split into GMF / MLP halves as (1, F) rows ------------
    wp, bp = params["predict"]                    # wp: (2F, 1)
    wp_gmf = wp[:F, 0].reshape(1, F).astype(f32)
    wp_mlp = wp[F:, 0].reshape(1, F).astype(f32)
    bp_2d = bp.reshape(1, 1).astype(f32)
    args += [wp_gmf, wp_mlp, bp_2d]
    in_specs += [
        pl.BlockSpec((1, F), lambda i: (0, 0)),
        pl.BlockSpec((1, F), lambda i: (0, 0)),
        pl.BlockSpec((1, 1), lambda i: (0, 0)),
    ]

    out = pl.pallas_call(
        _make_neumf_kernel(num_layer_mlp),
        out_shape=jax.ShapeDtypeStruct((B, 1), f32),
        grid=(B // tb,),
        in_specs=in_specs,
        out_specs=pl.BlockSpec((tb, 1), lambda i: (i, 0)),
        compiler_params=pltpu.CompilerParams(
            dimension_semantics=("parallel",)),   # batch tiles are independent
    )(*args)
    return out.reshape(-1)                        # .view(-1)


# -----------------------------------------------------------------------------
# Deterministic parameter init (mirrors NeuMF.__init__ shapes / init scheme)
# -----------------------------------------------------------------------------
def init_neumf_params(key, num_user, num_item, num_factor, num_layer_mlp):
    keys = jax.random.split(key, 5 + num_layer_mlp)

    # Embeddings ~ N(0, 0.01)
    params = {
        "embed_user_GMF": 0.01 * jax.random.normal(
            keys[0], (num_user, num_factor), jnp.float32),
        "embed_item_GMF": 0.01 * jax.random.normal(
            keys[1], (num_item, num_factor), jnp.float32),
        "embed_user_MLP": 0.01 * jax.random.normal(
            keys[2], (num_user, num_factor), jnp.float32),
        "embed_item_MLP": 0.01 * jax.random.normal(
            keys[3], (num_item, num_factor), jnp.float32),
    }

    # MLP layers: xavier_uniform weights, zero bias; stored (in, out).
    mlp = []
    for i in range(num_layer_mlp):
        input_size = num_factor * 2 ** (num_layer_mlp - i)
        in_f = num_factor * 2 if i == 0 else input_size
        out_f = input_size // 2
        bound = math.sqrt(6.0 / (in_f + out_f))
        w = jax.random.uniform(keys[4 + i], (in_f, out_f), jnp.float32,
                               minval=-bound, maxval=bound)
        b = jnp.zeros((out_f,), jnp.float32)
        mlp.append((w, b))
    params["mlp"] = mlp

    # Predict layer: kaiming_uniform(a=1, nonlinearity='sigmoid') -> gain = 1,
    # bound = sqrt(3 / fan_in); zero bias. Stored (in, out).
    in_f = num_factor * 2
    bound = math.sqrt(3.0 / in_f)
    wp = jax.random.uniform(keys[-1], (in_f, 1), jnp.float32,
                            minval=-bound, maxval=bound)
    bp = jnp.zeros((1,), jnp.float32)
    params["predict"] = (wp, bp)
    return params


# -----------------------------------------------------------------------------
# Pure-JAX reference (mirrors the kernel's bf16 operand rounding)
# -----------------------------------------------------------------------------
def neumf_reference(params, user, item, *, use_bf16=True):
    def q(a):  # round matmul operands to bf16 exactly like the kernel does
        return a.astype(jnp.bfloat16).astype(jnp.float32) if use_bf16 else a

    eu_g = q(jnp.take(params["embed_user_GMF"], user, axis=0))
    ei_g = q(jnp.take(params["embed_item_GMF"], item, axis=0))
    eu_m = q(jnp.take(params["embed_user_MLP"], user, axis=0))
    ei_m = q(jnp.take(params["embed_item_MLP"], item, axis=0))

    gmf = eu_g * ei_g
    x = jnp.concatenate([eu_m, ei_m], axis=-1)
    for w, b in params["mlp"]:
        x = jnp.maximum(q(x) @ q(w) + b, 0.0)
    concat = jnp.concatenate([gmf, x], axis=-1)
    wp, bp = params["predict"]
    return (concat @ wp + bp).reshape(-1)


# -----------------------------------------------------------------------------
if __name__ == "__main__":
    num_user, num_item = 50, 80
    num_factor, num_layer_mlp = 32, 3
    batch = 512          # small, but gives 2 grid steps at tb=256 (v7x megacore)
    tb = 256

    key = jax.random.PRNGKey(0)
    pkey, ukey, ikey = jax.random.split(key, 3)

    params = init_neumf_params(pkey, num_user, num_item, num_factor,
                               num_layer_mlp)
    user = jax.random.randint(ukey, (batch,), 0, num_user, jnp.int32)
    item = jax.random.randint(ikey, (batch,), 0, num_item, jnp.int32)

    pred = neumf_forward(params, user, item, tb=tb, use_bf16=True)
    pred = jax.block_until_ready(pred)

    ref = neumf_reference(params, user, item, use_bf16=True)
    assert pred.shape == (batch,)
    assert jnp.allclose(pred, ref, atol=1e-5, rtol=1e-4), (pred, ref)

    print("KERNEL_OK")
</pallas_src>

<mosaic_0001>
module attributes {stable_mosaic.version = 11 : i64} {
  func.func @kernel(%arg0: i32, %arg1: memref<256x32xbf16, #tpu.memory_space<vmem>>, %arg2: memref<256x32xbf16, #tpu.memory_space<vmem>>, %arg3: memref<256x32xbf16, #tpu.memory_space<vmem>>, %arg4: memref<256x32xbf16, #tpu.memory_space<vmem>>, %arg5: memref<32x128xbf16, #tpu.memory_space<vmem>>, %arg6: memref<32x128xbf16, #tpu.memory_space<vmem>>, %arg7: memref<1x128xf32, #tpu.memory_space<vmem>>, %arg8: memref<128x64xbf16, #tpu.memory_space<vmem>>, %arg9: memref<1x64xf32, #tpu.memory_space<vmem>>, %arg10: memref<64x32xbf16, #tpu.memory_space<vmem>>, %arg11: memref<1x32xf32, #tpu.memory_space<vmem>>, %arg12: memref<1x32xf32, #tpu.memory_space<vmem>>, %arg13: memref<1x32xf32, #tpu.memory_space<vmem>>, %arg14: memref<1x1xf32, #tpu.memory_space<vmem>>, %arg15: memref<256x1xf32, #tpu.memory_space<vmem>>) attributes {dimension_semantics = [#tpu.dimension_semantics<parallel>], iteration_bounds = array<i64: 2>, scalar_prefetch = 0 : i64, scratch_operands = 0 : i64, tpu.core_type = #tpu.core_type<tc>, window_params = [{transform_indices = @transform_0, window_bounds = array<i64: 256, 32>}, {transform_indices = @transform_1, window_bounds = array<i64: 256, 32>}, {transform_indices = @transform_2, window_bounds = array<i64: 256, 32>}, {transform_indices = @transform_3, window_bounds = array<i64: 256, 32>}, {pipeline_mode = #tpu.pipeline_mode<synchronous>, transform_indices = @transform_4, window_bounds = array<i64: 32, 128>}, {pipeline_mode = #tpu.pipeline_mode<synchronous>, transform_indices = @transform_5, window_bounds = array<i64: 32, 128>}, {pipeline_mode = #tpu.pipeline_mode<synchronous>, transform_indices = @transform_6, window_bounds = array<i64: 1, 128>}, {pipeline_mode = #tpu.pipeline_mode<synchronous>, transform_indices = @transform_7, window_bounds = array<i64: 128, 64>}, {pipeline_mode = #tpu.pipeline_mode<synchronous>, transform_indices = @transform_8, window_bounds = array<i64: 1, 64>}, {pipeline_mode = #tpu.pipeline_mode<synchronous>, transform_indices = @transform_9, window_bounds = array<i64: 64, 32>}, {pipeline_mode = #tpu.pipeline_mode<synchronous>, transform_indices = @transform_10, window_bounds = array<i64: 1, 32>}, {pipeline_mode = #tpu.pipeline_mode<synchronous>, transform_indices = @transform_11, window_bounds = array<i64: 1, 32>}, {pipeline_mode = #tpu.pipeline_mode<synchronous>, transform_indices = @transform_12, window_bounds = array<i64: 1, 32>}, {pipeline_mode = #tpu.pipeline_mode<synchronous>, transform_indices = @transform_13, window_bounds = array<i64: 1, 1>}, {transform_indices = @transform_14, window_bounds = array<i64: 256, 1>}]} {
    %c0 = arith.constant 0 : index
    %c0_0 = arith.constant 0 : index
    %0 = vector.load %arg1[%c0, %c0_0] : memref<256x32xbf16, #tpu.memory_space<vmem>>, vector<256x32xbf16>
    %1 = arith.extf %0 : vector<256x32xbf16> to vector<256x32xf32>
    %c0_1 = arith.constant 0 : index
    %c0_2 = arith.constant 0 : index
    %2 = vector.load %arg2[%c0_1, %c0_2] : memref<256x32xbf16, #tpu.memory_space<vmem>>, vector<256x32xbf16>
    %3 = arith.extf %2 : vector<256x32xbf16> to vector<256x32xf32>
    %4 = arith.mulf %1, %3 : vector<256x32xf32>
    %c0_3 = arith.constant 0 : index
    %c0_4 = arith.constant 0 : index
    %5 = vector.load %arg3[%c0_3, %c0_4] : memref<256x32xbf16, #tpu.memory_space<vmem>>, vector<256x32xbf16>
    %c0_5 = arith.constant 0 : index
    %c0_6 = arith.constant 0 : index
    %6 = vector.load %arg5[%c0_5, %c0_6] : memref<32x128xbf16, #tpu.memory_space<vmem>>, vector<32x128xbf16>
    %cst = arith.constant dense<0.000000e+00> : vector<256x128xf32>
    %7 = tpu.matmul %5, %6, %cst {dimension_numbers = #tpu.dot_dimension_numbers<[1], [0], [0], [1], [0, 0, 1, 1], [], []>} : vector<256x32xbf16>, vector<32x128xbf16>, vector<256x128xf32> -> vector<256x128xf32>
    %c0_7 = arith.constant 0 : index
    %c0_8 = arith.constant 0 : index
    %8 = vector.load %arg4[%c0_7, %c0_8] : memref<256x32xbf16, #tpu.memory_space<vmem>>, vector<256x32xbf16>
    %c0_9 = arith.constant 0 : index
    %c0_10 = arith.constant 0 : index
    %9 = vector.load %arg6[%c0_9, %c0_10] : memref<32x128xbf16, #tpu.memory_space<vmem>>, vector<32x128xbf16>
    %cst_11 = arith.constant dense<0.000000e+00> : vector<256x128xf32>
    %10 = tpu.matmul %8, %9, %cst_11 {dimension_numbers = #tpu.dot_dimension_numbers<[1], [0], [0], [1], [0, 0, 1, 1], [], []>} : vector<256x32xbf16>, vector<32x128xbf16>, vector<256x128xf32> -> vector<256x128xf32>
    %11 = arith.addf %7, %10 : vector<256x128xf32>
    %c0_12 = arith.constant 0 : index
    %c0_13 = arith.constant 0 : index
    %12 = vector.load %arg7[%c0_12, %c0_13] : memref<1x128xf32, #tpu.memory_space<vmem>>, vector<1x128xf32>
    %13 = vector.broadcast %12 : vector<1x128xf32> to vector<256x128xf32>
    %14 = arith.addf %11, %13 : vector<256x128xf32>
    %cst_14 = arith.constant 0.000000e+00 : f32
    %15 = vector.broadcast %cst_14 : f32 to vector<256x128xf32>
    %16 = arith.maximumf %14, %15 : vector<256x128xf32>
    %17 = arith.truncf %16 : vector<256x128xf32> to vector<256x128xbf16>
    %c0_15 = arith.constant 0 : index
    %c0_16 = arith.constant 0 : index
    %18 = vector.load %arg8[%c0_15, %c0_16] : memref<128x64xbf16, #tpu.memory_space<vmem>>, vector<128x64xbf16>
    %cst_17 = arith.constant dense<0.000000e+00> : vector<256x64xf32>
    %19 = tpu.matmul %17, %18, %cst_17 {dimension_numbers = #tpu.dot_dimension_numbers<[1], [0], [0], [1], [0, 0, 1, 1], [], []>} : vector<256x128xbf16>, vector<128x64xbf16>, vector<256x64xf32> -> vector<256x64xf32>
    %c0_18 = arith.constant 0 : index
    %c0_19 = arith.constant 0 : index
    %20 = vector.load %arg9[%c0_18, %c0_19] : memref<1x64xf32, #tpu.memory_space<vmem>>, vector<1x64xf32>
    %21 = vector.broadcast %20 : vector<1x64xf32> to vector<256x64xf32>
    %22 = arith.addf %19, %21 : vector<256x64xf32>
    %cst_20 = arith.constant 0.000000e+00 : f32
    %23 = vector.broadcast %cst_20 : f32 to vector<256x64xf32>
    %24 = arith.maximumf %22, %23 : vector<256x64xf32>
    %25 = arith.truncf %24 : vector<256x64xf32> to vector<256x64xbf16>
    %c0_21 = arith.constant 0 : index
    %c0_22 = arith.constant 0 : index
    %26 = vector.load %arg10[%c0_21, %c0_22] : memref<64x32xbf16, #tpu.memory_space<vmem>>, vector<64x32xbf16>
    %cst_23 = arith.constant dense<0.000000e+00> : vector<256x32xf32>
    %27 = tpu.matmul %25, %26, %cst_23 {dimension_numbers = #tpu.dot_dimension_numbers<[1], [0], [0], [1], [0, 0, 1, 1], [], []>} : vector<256x64xbf16>, vector<64x32xbf16>, vector<256x32xf32> -> vector<256x32xf32>
    %c0_24 = arith.constant 0 : index
    %c0_25 = arith.constant 0 : index
    %28 = vector.load %arg11[%c0_24, %c0_25] : memref<1x32xf32, #tpu.memory_space<vmem>>, vector<1x32xf32>
    %29 = vector.broadcast %28 : vector<1x32xf32> to vector<256x32xf32>
    %30 = arith.addf %27, %29 : vector<256x32xf32>
    %cst_26 = arith.constant 0.000000e+00 : f32
    %31 = vector.broadcast %cst_26 : f32 to vector<256x32xf32>
    %32 = arith.maximumf %30, %31 : vector<256x32xf32>
    %c0_27 = arith.constant 0 : index
    %c0_28 = arith.constant 0 : index
    %33 = vector.load %arg12[%c0_27, %c0_28] : memref<1x32xf32, #tpu.memory_space<vmem>>, vector<1x32xf32>
    %34 = vector.broadcast %33 : vector<1x32xf32> to vector<256x32xf32>
    %35 = arith.mulf %4, %34 : vector<256x32xf32>
    %cst_29 = arith.constant dense<0.000000e+00> : vector<256xf32>
    %36 = vector.multi_reduction <add>, %35, %cst_29 [1] : vector<256x32xf32> to vector<256xf32>
    %37 = vector.shape_cast %36 : vector<256xf32> to vector<256x1xf32>
    %c0_30 = arith.constant 0 : index
    %c0_31 = arith.constant 0 : index
    %38 = vector.load %arg13[%c0_30, %c0_31] : memref<1x32xf32, #tpu.memory_space<vmem>>, vector<1x32xf32>
    %39 = vector.broadcast %38 : vector<1x32xf32> to vector<256x32xf32>
    %40 = arith.mulf %32, %39 : vector<256x32xf32>
    %cst_32 = arith.constant dense<0.000000e+00> : vector<256xf32>
    %41 = vector.multi_reduction <add>, %40, %cst_32 [1] : vector<256x32xf32> to vector<256xf32>
    %42 = vector.shape_cast %41 : vector<256xf32> to vector<256x1xf32>
    %43 = arith.addf %37, %42 : vector<256x1xf32>
    %c0_33 = arith.constant 0 : index
    %c0_34 = arith.constant 0 : index
    %44 = vector.load %arg14[%c0_33, %c0_34] : memref<1x1xf32, #tpu.memory_space<vmem>>, vector<1x1xf32>
    %45 = vector.broadcast %44 : vector<1x1xf32> to vector<256x1xf32>
    %46 = arith.addf %43, %45 : vector<256x1xf32>
    %c0_35 = arith.constant 0 : index
    %c0_36 = arith.constant 0 : index
    %47 = vector.load %arg15[%c0_35, %c0_36] : memref<256x1xf32, #tpu.memory_space<vmem>>, vector<256x1xf32>
    tpu.vector_store %arg15[%c0_35, %c0_36], %46 {strides = array<i32>} : memref<256x1xf32, #tpu.memory_space<vmem>>, vector<256x1xf32>,
    return
  }
  func.func @transform_0(%arg0: i32) -> (i32, i32) {
    %c0_i32 = arith.constant 0 : i32
    %c0_i32_0 = arith.constant 0 : i32
    return %arg0, %c0_i32 : i32, i32
  }
  func.func @transform_1(%arg0: i32) -> (i32, i32) {
    %c0_i32 = arith.constant 0 : i32
    %c0_i32_0 = arith.constant 0 : i32
    return %arg0, %c0_i32 : i32, i32
  }
  func.func @transform_2(%arg0: i32) -> (i32, i32) {
    %c0_i32 = arith.constant 0 : i32
    %c0_i32_0 = arith.constant 0 : i32
    return %arg0, %c0_i32 : i32, i32
  }
  func.func @transform_3(%arg0: i32) -> (i32, i32) {
    %c0_i32 = arith.constant 0 : i32
    %c0_i32_0 = arith.constant 0 : i32
    return %arg0, %c0_i32 : i32, i32
  }
  func.func @transform_4(%arg0: i32) -> (i32, i32) {
    %c0_i32 = arith.constant 0 : i32
    %c0_i32_0 = arith.constant 0 : i32
    %c0_i32_1 = arith.constant 0 : i32
    return %c0_i32, %c0_i32_0 : i32, i32
  }
  func.func @transform_5(%arg0: i32) -> (i32, i32) {
    %c0_i32 = arith.constant 0 : i32
    %c0_i32_0 = arith.constant 0 : i32
    %c0_i32_1 = arith.constant 0 : i32
    return %c0_i32, %c0_i32_0 : i32, i32
  }
  func.func @transform_6(%arg0: i32) -> (i32, i32) {
    %c0_i32 = arith.constant 0 : i32
    %c0_i32_0 = arith.constant 0 : i32
    %c0_i32_1 = arith.constant 0 : i32
    return %c0_i32, %c0_i32_0 : i32, i32
  }
  func.func @transform_7(%arg0: i32) -> (i32, i32) {
    %c0_i32 = arith.constant 0 : i32
    %c0_i32_0 = arith.constant 0 : i32
    %c0_i32_1 = arith.constant 0 : i32
    return %c0_i32, %c0_i32_0 : i32, i32
  }
  func.func @transform_8(%arg0: i32) -> (i32, i32) {
    %c0_i32 = arith.constant 0 : i32
    %c0_i32_0 = arith.constant 0 : i32
    %c0_i32_1 = arith.constant 0 : i32
    return %c0_i32, %c0_i32_0 : i32, i32
  }
  func.func @transform_9(%arg0: i32) -> (i32, i32) {
    %c0_i32 = arith.constant 0 : i32
    %c0_i32_0 = arith.constant 0 : i32
    %c0_i32_1 = arith.constant 0 : i32
    return %c0_i32, %c0_i32_0 : i32, i32
  }
  func.func @transform_10(%arg0: i32) -> (i32, i32) {
    %c0_i32 = arith.constant 0 : i32
    %c0_i32_0 = arith.constant 0 : i32
    %c0_i32_1 = arith.constant 0 : i32
    return %c0_i32, %c0_i32_0 : i32, i32
  }
  func.func @transform_11(%arg0: i32) -> (i32, i32) {
    %c0_i32 = arith.constant 0 : i32
    %c0_i32_0 = arith.constant 0 : i32
    %c0_i32_1 = arith.constant 0 : i32
    return %c0_i32, %c0_i32_0 : i32, i32
  }
  func.func @transform_12(%arg0: i32) -> (i32, i32) {
    %c0_i32 = arith.constant 0 : i32
    %c0_i32_0 = arith.constant 0 : i32
    %c0_i32_1 = arith.constant 0 : i32
    return %c0_i32, %c0_i32_0 : i32, i32
  }
  func.func @transform_13(%arg0: i32) -> (i32, i32) {
    %c0_i32 = arith.constant 0 : i32
    %c0_i32_0 = arith.constant 0 : i32
    %c0_i32_1 = arith.constant 0 : i32
    return %c0_i32, %c0_i32_0 : i32, i32
  }
  func.func @transform_14(%arg0: i32) -> (i32, i32) {
    %c0_i32 = arith.constant 0 : i32
    %c0_i32_0 = arith.constant 0 : i32
    return %arg0, %c0_i32 : i32, i32
  }
}

</mosaic_0001>

<llo_original>
// kernel: tpu_custom_call.1
$region0: #{tpu_custom_call.1}
  #allocation0 [shape = 'u32[]', space=smem, size = 0x4, offset = 0x4, fixed_abs, tag = 'smem constant byte address 0x4 - core index']
  #allocation1 [shape = 'u32[144,128]{1,0:T(1,128)}', space=vmem, size = 0x12000, scoped, tag = 'internal scratch']
  #allocation2 [shape = 'f32[1,1]{1,0:T(1,128)S(1)}', space=vmem, size = 0x200, scoped, tag = 'scoped memory for tpu_custom_call.1']
  %s0 = inlined_call_operand.vmem [shape: bf16[512,32], index: 0, kind: input, shape index: {}]
  %s1 = inlined_call_operand.vmem [shape: bf16[512,32], index: 1, kind: input, shape index: {}]
  %s2 = inlined_call_operand.vmem [shape: bf16[512,32], index: 2, kind: input, shape index: {}]
  %s3 = inlined_call_operand.vmem [shape: bf16[512,32], index: 3, kind: input, shape index: {}]
  %s4 = inlined_call_operand.vmem [shape: bf16[32,128], index: 4, kind: input, shape index: {}]
  %s5 = inlined_call_operand.vmem [shape: bf16[32,128], index: 5, kind: input, shape index: {}]
  %s6 = inlined_call_operand.vmem [shape: f32[1,128], index: 6, kind: input, shape index: {}]
  %s7 = inlined_call_operand.vmem [shape: bf16[128,64], index: 7, kind: input, shape index: {}]
  %s8 = inlined_call_operand.vmem [shape: f32[1,64], index: 8, kind: input, shape index: {}]
  %s9 = inlined_call_operand.vmem [shape: bf16[64,32], index: 9, kind: input, shape index: {}]
  %s10 = inlined_call_operand.vmem [shape: f32[1,32], index: 10, kind: input, shape index: {}]
  %s11 = inlined_call_operand.vmem [shape: f32[1,32], index: 11, kind: input, shape index: {}]
  %s12 = inlined_call_operand.vmem [shape: f32[1,32], index: 12, kind: input, shape index: {}]
  %s13 = inlined_call_operand.<no memory space> [shape: f32[1,1], index: 13, kind: input, shape index: {}]
  %s14 = inlined_call_operand.vmem [shape: f32[512,1], index: 14, kind: output, shape index: {}]
  %s15 = sld [smem:[#allocation0]]
  $region89: #{tpu_custom_call.1} parent=0
    _
  %s17 = ssub.s32 1, %s15
  %s18 = scalar_select 0, %s17, %s15
  %v19 = vstv %s13
  %20 = vst [vmem:[#allocation2] sm:$0x1] %v19
  loop: start=0, step=1, limit=4
  $region2: #{tpu_custom_call.1} parent=0 // loop_pre_header
    _
  $region3: #{tpu_custom_call.1} parent=0 // loop_header
    %s22 = sphi 0, %s26
    %p23 = scmp.ge.s32.totalorder %s22, 4
    %s32 = sphi 0, %s34
    %s35 = sphi 0, %s32
    %s36 = sphi 0, %s35
    %s52 = sphi 0, %s36
    %s58 = sphi 0, %s60
    %s61 = sphi 0, %s58
    %s62 = sphi 0, %s61
    %s78 = sphi 0, %s62
    %s84 = sphi 0, %s86
    %s87 = sphi 0, %s84
    %s88 = sphi 0, %s87
    %s104 = sphi 0, %s88
    %s110 = sphi 0, %s112
    %s113 = sphi 0, %s110
    %s114 = sphi 0, %s113
    %s130 = sphi 0, %s114
    %s134 = sphi 0, %s134
    %s136 = sphi 0, %s134
    %s137 = sphi 0, %s136
    %s151 = sphi 0, %s137
    %s155 = sphi 0, %s155
    %s157 = sphi 0, %s155
    %s158 = sphi 0, %s157
    %s172 = sphi 0, %s158
    %s176 = sphi 0, %s176
    %s178 = sphi 0, %s176
    %s179 = sphi 0, %s178
    %s193 = sphi 0, %s179
    %s197 = sphi 0, %s197
    %s199 = sphi 0, %s197
    %s200 = sphi 0, %s199
    %s214 = sphi 0, %s200
    %s218 = sphi 0, %s218
    %s220 = sphi 0, %s218
    %s221 = sphi 0, %s220
    %s235 = sphi 0, %s221
    %s239 = sphi 0, %s239
    %s241 = sphi 0, %s239
    %s242 = sphi 0, %s241
    %s256 = sphi 0, %s242
    %s260 = sphi 0, %s260
    %s262 = sphi 0, %s260
    %s263 = sphi 0, %s262
    %s277 = sphi 0, %s263
    %s281 = sphi 0, %s281
    %s283 = sphi 0, %s281
    %s284 = sphi 0, %s283
    %s298 = sphi 0, %s284
    %s302 = sphi 0, %s302
    %s304 = sphi 0, %s302
    %s305 = sphi 0, %s304
    %s319 = sphi 0, %s305
    %s323 = sphi 0, %s323
    %s325 = sphi 0, %s323
    %s326 = sphi 0, %s325
    %s340 = sphi 0, %s326
    %s346 = sphi 0, %s348
    %s349 = sphi 0, %s346
    %s350 = sphi 0, %s349
    %s366 = sphi 0, %s350
  $region4: #{tpu_custom_call.1} parent=0 // loop_header_branch
    %25 = sbr.rel (%p23) target = $region8
  $region5: #{tpu_custom_call.1} parent=0 // loop_body
    %s27 = ssub.s32 %s22, 1
    %s28 = ssub.s32 %s22, 2
    %s29 = sadd.s32 %s22, 1
    %s30 = ssub.s32 %s22, %s29
    %p31 = scmp.eq.s32.totalorder %s30, 0
    %s33 = sadd.s32 %s32, 1
    %s34 = scalar_select %p31, %s32, %s33
    %p37 = pneg %p31
    %p38 = scmp.eq.s32.totalorder %s22, 1
    %p39 = por %p37, %p38
    %p40 = scmp.ne.s32.totalorder %s32, %s35
    %p41 = scmp.eq.s32.totalorder %s22, 0
    %p42 = por %p40, %p41
    %p43 = scmp.ne.s32.totalorder %s32, %s35
    %p44 = scmp.eq.s32.totalorder %s27, 1
    %p45 = por %p43, %p44
    %p46 = scmp.ne.s32.totalorder %s35, %s36
    %p47 = scmp.eq.s32.totalorder %s27, 0
    %p48 = por %p46, %p47
    %p49 = scmp.ne.s32.totalorder %s35, %s36
    %p50 = scmp.eq.s32.totalorder %s28, 1
    %p51 = por %p49, %p50
    %p53 = scmp.ne.s32.totalorder %s36, %s52
    %p54 = scmp.eq.s32.totalorder %s28, 0
    %p55 = por %p53, %p54
    %s56 = ssub.s32 %s22, %s29
    %p57 = scmp.eq.s32.totalorder %s56, 0
    %s59 = sadd.s32 %s58, 1
    %s60 = scalar_select %p57, %s58, %s59
    %p63 = pneg %p57
    %p64 = scmp.eq.s32.totalorder %s22, 1
    %p65 = por %p63, %p64
    %p66 = scmp.ne.s32.totalorder %s58, %s61
    %p67 = scmp.eq.s32.totalorder %s22, 0
    %p68 = por %p66, %p67
    %p69 = scmp.ne.s32.totalorder %s58, %s61
    %p70 = scmp.eq.s32.totalorder %s27, 1
    %p71 = por %p69, %p70
    %p72 = scmp.ne.s32.totalorder %s61, %s62
    %p73 = scmp.eq.s32.totalorder %s27, 0
    %p74 = por %p72, %p73
    %p75 = scmp.ne.s32.totalorder %s61, %s62
    %p76 = scmp.eq.s32.totalorder %s28, 1
    %p77 = por %p75, %p76
    %p79 = scmp.ne.s32.totalorder %s62, %s78
    %p80 = scmp.eq.s32.totalorder %s28, 0
    %p81 = por %p79, %p80
    %s82 = ssub.s32 %s22, %s29
    %p83 = scmp.eq.s32.totalorder %s82, 0
    %s85 = sadd.s32 %s84, 1
    %s86 = scalar_select %p83, %s84, %s85
    %p89 = pneg %p83
    %p90 = scmp.eq.s32.totalorder %s22, 1
    %p91 = por %p89, %p90
    %p92 = scmp.ne.s32.totalorder %s84, %s87
    %p93 = scmp.eq.s32.totalorder %s22, 0
    %p94 = por %p92, %p93
    %p95 = scmp.ne.s32.totalorder %s84, %s87
    %p96 = scmp.eq.s32.totalorder %s27, 1
    %p97 = por %p95, %p96
    %p98 = scmp.ne.s32.totalorder %s87, %s88
    %p99 = scmp.eq.s32.totalorder %s27, 0
    %p100 = por %p98, %p99
    %p101 = scmp.ne.s32.totalorder %s87, %s88
    %p102 = scmp.eq.s32.totalorder %s28, 1
    %p103 = por %p101, %p102
    %p105 = scmp.ne.s32.totalorder %s88, %s104
    %p106 = scmp.eq.s32.totalorder %s28, 0
    %p107 = por %p105, %p106
    %s108 = ssub.s32 %s22, %s29
    %p109 = scmp.eq.s32.totalorder %s108, 0
    %s111 = sadd.s32 %s110, 1
    %s112 = scalar_select %p109, %s110, %s111
    %p115 = pneg %p109
    %p116 = scmp.eq.s32.totalorder %s22, 1
    %p117 = por %p115, %p116
    %p118 = scmp.ne.s32.totalorder %s110, %s113
    %p119 = scmp.eq.s32.totalorder %s22, 0
    %p120 = por %p118, %p119
    %p121 = scmp.ne.s32.totalorder %s110, %s113
    %p122 = scmp.eq.s32.totalorder %s27, 1
    %p123 = por %p121, %p122
    %p124 = scmp.ne.s32.totalorder %s113, %s114
    %p125 = scmp.eq.s32.totalorder %s27, 0
    %p126 = por %p124, %p125
    %p127 = scmp.ne.s32.totalorder %s113, %s114
    %p128 = scmp.eq.s32.totalorder %s28, 1
    %p129 = por %p127, %p128
    %p131 = scmp.ne.s32.totalorder %s114, %s130
    %p132 = scmp.eq.s32.totalorder %s28, 0
    %p133 = por %p131, %p132
    %s135 = sadd.s32 %s134, 1
    %p138 = scmp.eq.s32.totalorder %s22, 1
    %p139 = scmp.ne.s32.totalorder %s134, %s136
    %p140 = scmp.eq.s32.totalorder %s22, 0
    %p141 = por %p139, %p140
    %p142 = scmp.ne.s32.totalorder %s134, %s136
    %p143 = scmp.eq.s32.totalorder %s27, 1
    %p144 = por %p142, %p143
    %p145 = scmp.ne.s32.totalorder %s136, %s137
    %p146 = scmp.eq.s32.totalorder %s27, 0
    %p147 = por %p145, %p146
    %p148 = scmp.ne.s32.totalorder %s136, %s137
    %p149 = scmp.eq.s32.totalorder %s28, 1
    %p150 = por %p148, %p149
    %p152 = scmp.ne.s32.totalorder %s137, %s151
    %p153 = scmp.eq.s32.totalorder %s28, 0
    %p154 = por %p152, %p153
    %s156 = sadd.s32 %s155, 1
    %p159 = scmp.eq.s32.totalorder %s22, 1
    %p160 = scmp.ne.s32.totalorder %s155, %s157
    %p161 = scmp.eq.s32.totalorder %s22, 0
    %p162 = por %p160, %p161
    %p163 = scmp.ne.s32.totalorder %s155, %s157
    %p164 = scmp.eq.s32.totalorder %s27, 1
    %p165 = por %p163, %p164
    %p166 = scmp.ne.s32.totalorder %s157, %s158
    %p167 = scmp.eq.s32.totalorder %s27, 0
    %p168 = por %p166, %p167
    %p169 = scmp.ne.s32.totalorder %s157, %s158
    %p170 = scmp.eq.s32.totalorder %s28, 1
    %p171 = por %p169, %p170
    %p173 = scmp.ne.s32.totalorder %s158, %s172
    %p174 = scmp.eq.s32.totalorder %s28, 0
    %p175 = por %p173, %p174
    %s177 = sadd.s32 %s176, 1
    %p180 = scmp.eq.s32.totalorder %s22, 1
    %p181 = scmp.ne.s32.totalorder %s176, %s178
    %p182 = scmp.eq.s32.totalorder %s22, 0
    %p183 = por %p181, %p182
    %p184 = scmp.ne.s32.totalorder %s176, %s178
    %p185 = scmp.eq.s32.totalorder %s27, 1
    %p186 = por %p184, %p185
    %p187 = scmp.ne.s32.totalorder %s178, %s179
    %p188 = scmp.eq.s32.totalorder %s27, 0
    %p189 = por %p187, %p188
    %p190 = scmp.ne.s32.totalorder %s178, %s179
    %p191 = scmp.eq.s32.totalorder %s28, 1
    %p192 = por %p190, %p191
    %p194 = scmp.ne.s32.totalorder %s179, %s193
    %p195 = scmp.eq.s32.totalorder %s28, 0
    %p196 = por %p194, %p195
    %s198 = sadd.s32 %s197, 1
    %p201 = scmp.eq.s32.totalorder %s22, 1
    %p202 = scmp.ne.s32.totalorder %s197, %s199
    %p203 = scmp.eq.s32.totalorder %s22, 0
    %p204 = por %p202, %p203
    %p205 = scmp.ne.s32.totalorder %s197, %s199
    %p206 = scmp.eq.s32.totalorder %s27, 1
    %p207 = por %p205, %p206
    %p208 = scmp.ne.s32.totalorder %s199, %s200
    %p209 = scmp.eq.s32.totalorder %s27, 0
    %p210 = por %p208, %p209
    %p211 = scmp.ne.s32.totalorder %s199, %s200
    %p212 = scmp.eq.s32.totalorder %s28, 1
    %p213 = por %p211, %p212
    %p215 = scmp.ne.s32.totalorder %s200, %s214
    %p216 = scmp.eq.s32.totalorder %s28, 0
    %p217 = por %p215, %p216
    %s219 = sadd.s32 %s218, 1
    %p222 = scmp.eq.s32.totalorder %s22, 1
    %p223 = scmp.ne.s32.totalorder %s218, %s220
    %p224 = scmp.eq.s32.totalorder %s22, 0
    %p225 = por %p223, %p224
    %p226 = scmp.ne.s32.totalorder %s218, %s220
    %p227 = scmp.eq.s32.totalorder %s27, 1
    %p228 = por %p226, %p227
    %p229 = scmp.ne.s32.totalorder %s220, %s221
    %p230 = scmp.eq.s32.totalorder %s27, 0
    %p231 = por %p229, %p230
    %p232 = scmp.ne.s32.totalorder %s220, %s221
    %p233 = scmp.eq.s32.totalorder %s28, 1
    %p234 = por %p232, %p233
    %p236 = scmp.ne.s32.totalorder %s221, %s235
    %p237 = scmp.eq.s32.totalorder %s28, 0
    %p238 = por %p236, %p237
    %s240 = sadd.s32 %s239, 1
    %p243 = scmp.eq.s32.totalorder %s22, 1
    %p244 = scmp.ne.s32.totalorder %s239, %s241
    %p245 = scmp.eq.s32.totalorder %s22, 0
    %p246 = por %p244, %p245
    %p247 = scmp.ne.s32.totalorder %s239, %s241
    %p248 = scmp.eq.s32.totalorder %s27, 1
    %p249 = por %p247, %p248
    %p250 = scmp.ne.s32.totalorder %s241, %s242
    %p251 = scmp.eq.s32.totalorder %s27, 0
    %p252 = por %p250, %p251
    %p253 = scmp.ne.s32.totalorder %s241, %s242
    %p254 = scmp.eq.s32.totalorder %s28, 1
    %p255 = por %p253, %p254
    %p257 = scmp.ne.s32.totalorder %s242, %s256
    %p258 = scmp.eq.s32.totalorder %s28, 0
    %p259 = por %p257, %p258
    %s261 = sadd.s32 %s260, 1
    %p264 = scmp.eq.s32.totalorder %s22, 1
    %p265 = scmp.ne.s32.totalorder %s260, %s262
    %p266 = scmp.eq.s32.totalorder %s22, 0
    %p267 = por %p265, %p266
    %p268 = scmp.ne.s32.totalorder %s260, %s262
    %p269 = scmp.eq.s32.totalorder %s27, 1
    %p270 = por %p268, %p269
    %p271 = scmp.ne.s32.totalorder %s262, %s263
    %p272 = scmp.eq.s32.totalorder %s27, 0
    %p273 = por %p271, %p272
    %p274 = scmp.ne.s32.totalorder %s262, %s263
    %p275 = scmp.eq.s32.totalorder %s28, 1
    %p276 = por %p274, %p275
    %p278 = scmp.ne.s32.totalorder %s263, %s277
    %p279 = scmp.eq.s32.totalorder %s28, 0
    %p280 = por %p278, %p279
    %s282 = sadd.s32 %s281, 1
    %p285 = scmp.eq.s32.totalorder %s22, 1
    %p286 = scmp.ne.s32.totalorder %s281, %s283
    %p287 = scmp.eq.s32.totalorder %s22, 0
    %p288 = por %p286, %p287
    %p289 = scmp.ne.s32.totalorder %s281, %s283
    %p290 = scmp.eq.s32.totalorder %s27, 1
    %p291 = por %p289, %p290
    %p292 = scmp.ne.s32.totalorder %s283, %s284
    %p293 = scmp.eq.s32.totalorder %s27, 0
    %p294 = por %p292, %p293
    %p295 = scmp.ne.s32.totalorder %s283, %s284
    %p296 = scmp.eq.s32.totalorder %s28, 1
    %p297 = por %p295, %p296
    %p299 = scmp.ne.s32.totalorder %s284, %s298
    %p300 = scmp.eq.s32.totalorder %s28, 0
    %p301 = por %p299, %p300
    %s303 = sadd.s32 %s302, 1
    %p306 = scmp.eq.s32.totalorder %s22, 1
    %p307 = scmp.ne.s32.totalorder %s302, %s304
    %p308 = scmp.eq.s32.totalorder %s22, 0
    %p309 = por %p307, %p308
    %p310 = scmp.ne.s32.totalorder %s302, %s304
    %p311 = scmp.eq.s32.totalorder %s27, 1
    %p312 = por %p310, %p311
    %p313 = scmp.ne.s32.totalorder %s304, %s305
    %p314 = scmp.eq.s32.totalorder %s27, 0
    %p315 = por %p313, %p314
    %p316 = scmp.ne.s32.totalorder %s304, %s305
    %p317 = scmp.eq.s32.totalorder %s28, 1
    %p318 = por %p316, %p317
    %p320 = scmp.ne.s32.totalorder %s305, %s319
    %p321 = scmp.eq.s32.totalorder %s28, 0
    %p322 = por %p320, %p321
    %s324 = sadd.s32 %s323, 1
    %p327 = scmp.eq.s32.totalorder %s22, 1
    %p328 = scmp.ne.s32.totalorder %s323, %s325
    %p329 = scmp.eq.s32.totalorder %s22, 0
    %p330 = por %p328, %p329
    %p331 = scmp.ne.s32.totalorder %s323, %s325
    %p332 = scmp.eq.s32.totalorder %s27, 1
    %p333 = por %p331, %p332
    %p334 = scmp.ne.s32.totalorder %s325, %s326
    %p335 = scmp.eq.s32.totalorder %s27, 0
    %p336 = por %p334, %p335
    %p337 = scmp.ne.s32.totalorder %s325, %s326
    %p338 = scmp.eq.s32.totalorder %s28, 1
    %p339 = por %p337, %p338
    %p341 = scmp.ne.s32.totalorder %s326, %s340
    %p342 = scmp.eq.s32.totalorder %s28, 0
    %p343 = por %p341, %p342
    %s344 = ssub.s32 %s22, %s29
    %p345 = scmp.eq.s32.totalorder %s344, 0
    %s347 = sadd.s32 %s346, 1
    %s348 = scalar_select %p345, %s346, %s347
    %p351 = pneg %p345
    %p352 = scmp.eq.s32.totalorder %s22, 1
    %p353 = por %p351, %p352
    %p354 = scmp.ne.s32.totalorder %s346, %s349
    %p355 = scmp.eq.s32.totalorder %s22, 0
    %p356 = por %p354, %p355
    %p357 = scmp.ne.s32.totalorder %s346, %s349
    %p358 = scmp.eq.s32.totalorder %s27, 1
    %p359 = por %p357, %p358
    %p360 = scmp.ne.s32.totalorder %s349, %s350
    %p361 = scmp.eq.s32.totalorder %s27, 0
    %p362 = por %p360, %p361
    %p363 = scmp.ne.s32.totalorder %s349, %s350
    %p364 = scmp.eq.s32.totalorder %s28, 1
    %p365 = por %p363, %p364
    %p367 = scmp.ne.s32.totalorder %s350, %s366
    %p368 = scmp.eq.s32.totalorder %s28, 0
    %p369 = por %p367, %p368
    %p370 = scmp.le.s32.totalorder 1, %s22
    %p371 = scmp.lt.s32.totalorder %s22, 3
    %p372 = pnand %p370, %p371
    %p373 = pneg %p372
    // Predicated region
    $region9: #{tpu_custom_call.1} parent=5 // pred_check
      _
    $region10: #{tpu_custom_call.1} parent=5 // pred_check_branch
      %375 = sbr.rel (%p372) target = $region12
    $region11: #{tpu_custom_call.1} parent=5 // pred_region
      %s376 = ssub.s32 %s22, 1
      // Predicated region
      $region13: #{tpu_custom_call.1} parent=11 // pred_check
        %p377 = pneg %p147
      $region14: #{tpu_custom_call.1} parent=11 // pred_check_branch
        %379 = sbr.rel (%p377) target = $region16
      $region15: #{tpu_custom_call.1} parent=11 // pred_region
        _
      $region16: #{tpu_custom_call.1} parent=11 // pred_fallthru
        _
      // Predicated region
      $region17: #{tpu_custom_call.1} parent=11 // pred_check
        %p380 = pneg %p168
      $region18: #{tpu_custom_call.1} parent=11 // pred_check_branch
        %382 = sbr.rel (%p380) target = $region20
      $region19: #{tpu_custom_call.1} parent=11 // pred_region
        _
      $region20: #{tpu_custom_call.1} parent=11 // pred_fallthru
        _
      // Predicated region
      $region21: #{tpu_custom_call.1} parent=11 // pred_check
        %p383 = pneg %p189
      $region22: #{tpu_custom_call.1} parent=11 // pred_check_branch
        %385 = sbr.rel (%p383) target = $region24
      $region23: #{tpu_custom_call.1} parent=11 // pred_region
        _
      $region24: #{tpu_custom_call.1} parent=11 // pred_fallthru
        _
      // Predicated region
      $region25: #{tpu_custom_call.1} parent=11 // pred_check
        %p386 = pneg %p210
      $region26: #{tpu_custom_call.1} parent=11 // pred_check_branch
        %388 = sbr.rel (%p386) target = $region28
      $region27: #{tpu_custom_call.1} parent=11 // pred_region
        _
      $region28: #{tpu_custom_call.1} parent=11 // pred_fallthru
        _
      // Predicated region
      $region29: #{tpu_custom_call.1} parent=11 // pred_check
        %p389 = pneg %p231
      $region30: #{tpu_custom_call.1} parent=11 // pred_check_branch
        %391 = sbr.rel (%p389) target = $region32
      $region31: #{tpu_custom_call.1} parent=11 // pred_region
        _
      $region32: #{tpu_custom_call.1} parent=11 // pred_fallthru
        _
      // Predicated region
      $region33: #{tpu_custom_call.1} parent=11 // pred_check
        %p392 = pneg %p252
      $region34: #{tpu_custom_call.1} parent=11 // pred_check_branch
        %394 = sbr.rel (%p392) target = $region36
      $region35: #{tpu_custom_call.1} parent=11 // pred_region
        _
      $region36: #{tpu_custom_call.1} parent=11 // pred_fallthru
        _
      // Predicated region
      $region37: #{tpu_custom_call.1} parent=11 // pred_check
        %p395 = pneg %p273
      $region38: #{tpu_custom_call.1} parent=11 // pred_check_branch
        %397 = sbr.rel (%p395) target = $region40
      $region39: #{tpu_custom_call.1} parent=11 // pred_region
        _
      $region40: #{tpu_custom_call.1} parent=11 // pred_fallthru
        _
      // Predicated region
      $region41: #{tpu_custom_call.1} parent=11 // pred_check
        %p398 = pneg %p294
      $region42: #{tpu_custom_call.1} parent=11 // pred_check_branch
        %400 = sbr.rel (%p398) target = $region44
      $region43: #{tpu_custom_call.1} parent=11 // pred_region
        _
      $region44: #{tpu_custom_call.1} parent=11 // pred_fallthru
        _
      // Predicated region
      $region45: #{tpu_custom_call.1} parent=11 // pred_check
        %p401 = pneg %p315
      $region46: #{tpu_custom_call.1} parent=11 // pred_check_branch
        %403 = sbr.rel (%p401) target = $region48
      $region47: #{tpu_custom_call.1} parent=11 // pred_region
        _
      $region48: #{tpu_custom_call.1} parent=11 // pred_fallthru
        _
      // Predicated region
      $region49: #{tpu_custom_call.1} parent=11 // pred_check
        %p404 = pneg %p336
      $region50: #{tpu_custom_call.1} parent=11 // pred_check_branch
        %406 = sbr.rel (%p404) target = $region52
      $region51: #{tpu_custom_call.1} parent=11 // pred_region
        _
      $region52: #{tpu_custom_call.1} parent=11 // pred_fallthru
        _
    $region12: #{tpu_custom_call.1} parent=5 // pred_fallthru
      _
    %p407 = scmp.lt.s32.totalorder %s22, 2
    // Predicated region
    $region53: #{tpu_custom_call.1} parent=5 // pred_check
      %p408 = pneg %p407
    $region54: #{tpu_custom_call.1} parent=5 // pred_check_branch
      %410 = sbr.rel (%p408) target = $region56
    $region55: #{tpu_custom_call.1} parent=5 // pred_region
      // Predicated region
      $region57: #{tpu_custom_call.1} parent=55 // pred_check
        %p411 = pneg %p42
      $region58: #{tpu_custom_call.1} parent=55 // pred_check_branch
        %413 = sbr.rel (%p411) target = $region60
      $region59: #{tpu_custom_call.1} parent=55 // pred_region
        %s414 = smul.u32 32, %s22
        %p415 = scmp.lt.s32.totalorder %s414, 63
        %s416 = scalar_select %p415, %s414, 63
        %s417 = smul.addr %s416, 4
        %s418 = scalar_lea.vmem %s0, %s417
        %s419 = smul.u32 32, %s22
      $region60: #{tpu_custom_call.1} parent=55 // pred_fallthru
        _
      // Predicated region
      $region61: #{tpu_custom_call.1} parent=55 // pred_check
        %p420 = pneg %p68
      $region62: #{tpu_custom_call.1} parent=55 // pred_check_branch
        %422 = sbr.rel (%p420) target = $region64
      $region63: #{tpu_custom_call.1} parent=55 // pred_region
        %s423 = smul.u32 32, %s22
        %p424 = scmp.lt.s32.totalorder %s423, 63
        %s425 = scalar_select %p424, %s423, 63
        %s426 = smul.addr %s425, 4
        %s427 = scalar_lea.vmem %s1, %s426
        %s428 = smul.u32 32, %s22
      $region64: #{tpu_custom_call.1} parent=55 // pred_fallthru
        _
      // Predicated region
      $region65: #{tpu_custom_call.1} parent=55 // pred_check
        %p429 = pneg %p94
      $region66: #{tpu_custom_call.1} parent=55 // pred_check_branch
        %431 = sbr.rel (%p429) target = $region68
      $region67: #{tpu_custom_call.1} parent=55 // pred_region
        %s432 = smul.u32 32, %s22
        %p433 = scmp.lt.s32.totalorder %s432, 63
        %s434 = scalar_select %p433, %s432, 63
        %s435 = smul.addr %s434, 4
        %s436 = scalar_lea.vmem %s2, %s435
        %s437 = smul.u32 32, %s22
      $region68: #{tpu_custom_call.1} parent=55 // pred_fallthru
        _
      // Predicated region
      $region69: #{tpu_custom_call.1} parent=55 // pred_check
        %p438 = pneg %p120
      $region70: #{tpu_custom_call.1} parent=55 // pred_check_branch
        %440 = sbr.rel (%p438) target = $region72
      $region71: #{tpu_custom_call.1} parent=55 // pred_region
        %s441 = smul.u32 32, %s22
        %p442 = scmp.lt.s32.totalorder %s441, 63
        %s443 = scalar_select %p442, %s441, 63
        %s444 = smul.addr %s443, 4
        %s445 = scalar_lea.vmem %s3, %s444
        %s446 = smul.u32 32, %s22
      $region72: #{tpu_custom_call.1} parent=55 // pred_fallthru
        _
    $region56: #{tpu_custom_call.1} parent=5 // pred_fallthru
      _
    %p447 = scmp.le.s32.totalorder 1, %s22
    %p448 = scmp.lt.s32.totalorder %s22, 3
    %p449 = pnand %p447, %p448
    %p450 = pneg %p449
    // Predicated region
    $region73: #{tpu_custom_call.1} parent=5 // pred_check
      _
    $region74: #{tpu_custom_call.1} parent=5 // pred_check_branch
      %452 = sbr.rel (%p449) target = $region76
    $region75: #{tpu_custom_call.1} parent=5 // pred_region
      %s453 = ssub.s32 %s22, 1
      %s454 = smul.u32 32, %s27
      %p455 = scmp.lt.s32.totalorder %s454, 63
      %s456 = scalar_select %p455, %s454, 63
      %s457 = smul.addr %s456, 4
      %s458 = scalar_lea.vmem %s0, %s457
      %p459 = pneg %p48
      %p460 = pneg %p45
      %s461 = smul.u32 32, %s27
      %p462 = scmp.lt.s32.totalorder %s461, 63
      %s463 = scalar_select %p462, %s461, 63
      %s464 = smul.addr %s463, 4
      %s465 = scalar_lea.vmem %s1, %s464
      %p466 = pneg %p74
      %p467 = pneg %p71
      %s468 = smul.u32 32, %s27
      %p469 = scmp.lt.s32.totalorder %s468, 63
      %s470 = scalar_select %p469, %s468, 63
      %s471 = smul.addr %s470, 4
      %s472 = scalar_lea.vmem %s2, %s471
      %p473 = pneg %p100
      %p474 = pneg %p97
      %s475 = smul.u32 32, %s27
      %p476 = scmp.lt.s32.totalorder %s475, 63
      %s477 = scalar_select %p476, %s475, 63
      %s478 = smul.addr %s477, 4
      %s479 = scalar_lea.vmem %s3, %s478
      %p480 = pneg %p126
      %p481 = pneg %p123
      %p482 = pneg %p147
      %p483 = pneg %p144
      %p484 = pneg %p168
      %p485 = pneg %p165
      %p486 = pneg %p189
      %p487 = pneg %p186
      %p488 = pneg %p210
      %p489 = pneg %p207
      %p490 = pneg %p231
      %p491 = pneg %p228
      %p492 = pneg %p252
      %p493 = pneg %p249
      %p494 = pneg %p273
      %p495 = pneg %p270
      %p496 = pneg %p294
      %p497 = pneg %p291
      %p498 = pneg %p315
      %p499 = pneg %p312
      %p500 = pneg %p336
      %p501 = pneg %p333
      %p502 = pneg %p362
      %p503 = pneg %p359
      %s504 = smul.u32 32, %s27
      %p505 = scmp.lt.s32.totalorder %s504, 63
      %s506 = scalar_select %p505, %s504, 63
      %s507 = smul.addr %s506, 8
      %s508 = scalar_lea.vmem %s14, %s507
      %s509 = smul.u32 32, %s27
      %p510 = scmp.lt.s32.totalorder %s509, 63
      %s511 = scalar_select %p510, %s509, 63
      %s512 = smul.addr %s511, 4
      %s513 = scalar_lea.vmem %s0, %s512
      %s514 = smul.u32 32, %s27
      %s515 = smul.u32 32, %s27
      %p516 = scmp.lt.s32.totalorder %s515, 63
      %s517 = scalar_select %p516, %s515, 63
      %s518 = smul.addr %s517, 4
      %s519 = scalar_lea.vmem %s1, %s518
      %s520 = smul.u32 32, %s27
      %s521 = smul.u32 32, %s27
      %p522 = scmp.lt.s32.totalorder %s521, 63
      %s523 = scalar_select %p522, %s521, 63
      %s524 = smul.addr %s523, 4
      %s525 = scalar_lea.vmem %s2, %s524
      %s526 = smul.u32 32, %s27
      %s527 = smul.u32 32, %s27
      %p528 = scmp.lt.s32.totalorder %s527, 63
      %s529 = scalar_select %p528, %s527, 63
      %s530 = smul.addr %s529, 4
      %s531 = scalar_lea.vmem %s3, %s530
      %s532 = smul.u32 32, %s27
      %s533 = smul.u32 32, %s27
      %p534 = scmp.lt.s32.totalorder %s533, 63
      %s535 = scalar_select %p534, %s533, 63
      %s536 = smul.addr %s535, 8
      %s537 = scalar_lea.vmem %s14, %s536
      %s538 = smul.u32 32, %s27
      %v540 = vld [vmem:[%s513] sm:$0xf]
      %v541 = vld [vmem:[%s513 + $0x4] sm:$0xf]
      %v542 = vld [vmem:[%s513 + $0x8] sm:$0xf]
      %v543 = vld [vmem:[%s513 + $0xc] sm:$0xf]
      %v544 = vld [vmem:[%s513 + $0x10] sm:$0xf]
      %v545 = vld [vmem:[%s513 + $0x14] sm:$0xf]
      %v546 = vld [vmem:[%s513 + $0x18] sm:$0xf]
      %v547 = vld [vmem:[%s513 + $0x1c] sm:$0xf]
      %v548 = vld [vmem:[%s513 + $0x20] sm:$0xf]
      %v549 = vld [vmem:[%s513 + $0x24] sm:$0xf]
      %v550 = vld [vmem:[%s513 + $0x28] sm:$0xf]
      %v551 = vld [vmem:[%s513 + $0x2c] sm:$0xf]
      %v552 = vld [vmem:[%s513 + $0x30] sm:$0xf]
      %v553 = vld [vmem:[%s513 + $0x34] sm:$0xf]
      %v554 = vld [vmem:[%s513 + $0x38] sm:$0xf]
      %v555 = vld [vmem:[%s513 + $0x3c] sm:$0xf]
      %v556 = vld [vmem:[%s513 + $0x40] sm:$0xf]
      %v557 = vld [vmem:[%s513 + $0x44] sm:$0xf]
      %v558 = vld [vmem:[%s513 + $0x48] sm:$0xf]
      %v559 = vld [vmem:[%s513 + $0x4c] sm:$0xf]
      %v560 = vld [vmem:[%s513 + $0x50] sm:$0xf]
      %v561 = vld [vmem:[%s513 + $0x54] sm:$0xf]
      %v562 = vld [vmem:[%s513 + $0x58] sm:$0xf]
      %v563 = vld [vmem:[%s513 + $0x5c] sm:$0xf]
      %v564 = vld [vmem:[%s513 + $0x60] sm:$0xf]
      %v565 = vld [vmem:[%s513 + $0x64] sm:$0xf]
      %v566 = vld [vmem:[%s513 + $0x68] sm:$0xf]
      %v567 = vld [vmem:[%s513 + $0x6c] sm:$0xf]
      %v568 = vld [vmem:[%s513 + $0x70] sm:$0xf]
      %v569 = vld [vmem:[%s513 + $0x74] sm:$0xf]
      %v570 = vld [vmem:[%s513 + $0x78] sm:$0xf]
      %v571 = vld [vmem:[%s513 + $0x7c] sm:$0xf]
      %v572 = vunpack.c.l.bf16 %v540
      %v573 = vunpack.c.l.bf16 %v541
      %v574 = vunpack.c.l.bf16 %v542
      %v575 = vunpack.c.l.bf16 %v543
      %v576 = vunpack.c.l.bf16 %v544
      %v577 = vunpack.c.l.bf16 %v545
      %v578 = vunpack.c.l.bf16 %v546
      %v579 = vunpack.c.l.bf16 %v547
      %v580 = vunpack.c.l.bf16 %v548
      %v581 = vunpack.c.l.bf16 %v549
      %v582 = vunpack.c.l.bf16 %v550
      %v583 = vunpack.c.l.bf16 %v551
      %v584 = vunpack.c.l.bf16 %v552
      %v585 = vunpack.c.l.bf16 %v553
      %v586 = vunpack.c.l.bf16 %v554
      %v587 = vunpack.c.l.bf16 %v555
      %v588 = vunpack.c.l.bf16 %v556
      %v589 = vunpack.c.l.bf16 %v557
      %v590 = vunpack.c.l.bf16 %v558
      %v591 = vunpack.c.l.bf16 %v559
      %v592 = vunpack.c.l.bf16 %v560
      %v593 = vunpack.c.l.bf16 %v561
      %v594 = vunpack.c.l.bf16 %v562
      %v595 = vunpack.c.l.bf16 %v563
      %v596 = vunpack.c.l.bf16 %v564
      %v597 = vunpack.c.l.bf16 %v565
      %v598 = vunpack.c.l.bf16 %v566
      %v599 = vunpack.c.l.bf16 %v567
      %v600 = vunpack.c.l.bf16 %v568
      %v601 = vunpack.c.l.bf16 %v569
      %v602 = vunpack.c.l.bf16 %v570
      %v603 = vunpack.c.l.bf16 %v571
      %v604 = vld [vmem:[%s519] sm:$0xf]
      %v605 = vld [vmem:[%s519 + $0x4] sm:$0xf]
      %v606 = vld [vmem:[%s519 + $0x8] sm:$0xf]
      %v607 = vld [vmem:[%s519 + $0xc] sm:$0xf]
      %v608 = vld [vmem:[%s519 + $0x10] sm:$0xf]
      %v609 = vld [vmem:[%s519 + $0x14] sm:$0xf]
      %v610 = vld [vmem:[%s519 + $0x18] sm:$0xf]
      %v611 = vld [vmem:[%s519 + $0x1c] sm:$0xf]
      %v612 = vld [vmem:[%s519 + $0x20] sm:$0xf]
      %v613 = vld [vmem:[%s519 + $0x24] sm:$0xf]
      %v614 = vld [vmem:[%s519 + $0x28] sm:$0xf]
      %v615 = vld [vmem:[%s519 + $0x2c] sm:$0xf]
      %v616 = vld [vmem:[%s519 + $0x30] sm:$0xf]
      %v617 = vld [vmem:[%s519 + $0x34] sm:$0xf]
      %v618 = vld [vmem:[%s519 + $0x38] sm:$0xf]
      %v619 = vld [vmem:[%s519 + $0x3c] sm:$0xf]
      %v620 = vld [vmem:[%s519 + $0x40] sm:$0xf]
      %v621 = vld [vmem:[%s519 + $0x44] sm:$0xf]
      %v622 = vld [vmem:[%s519 + $0x48] sm:$0xf]
      %v623 = vld [vmem:[%s519 + $0x4c] sm:$0xf]
      %v624 = vld [vmem:[%s519 + $0x50] sm:$0xf]
      %v625 = vld [vmem:[%s519 + $0x54] sm:$0xf]
      %v626 = vld [vmem:[%s519 + $0x58] sm:$0xf]
      %v627 = vld [vmem:[%s519 + $0x5c] sm:$0xf]
      %v628 = vld [vmem:[%s519 + $0x60] sm:$0xf]
      %v629 = vld [vmem:[%s519 + $0x64] sm:$0xf]
      %v630 = vld [vmem:[%s519 + $0x68] sm:$0xf]
      %v631 = vld [vmem:[%s519 + $0x6c] sm:$0xf]
      %v632 = vld [vmem:[%s519 + $0x70] sm:$0xf]
      %v633 = vld [vmem:[%s519 + $0x74] sm:$0xf]
      %v634 = vld [vmem:[%s519 + $0x78] sm:$0xf]
      %v635 = vld [vmem:[%s519 + $0x7c] sm:$0xf]
      %v636 = vunpack.c.l.bf16 %v604
      %v637 = vunpack.c.l.bf16 %v605
      %v638 = vunpack.c.l.bf16 %v606
      %v639 = vunpack.c.l.bf16 %v607
      %v640 = vunpack.c.l.bf16 %v608
      %v641 = vunpack.c.l.bf16 %v609
      %v642 = vunpack.c.l.bf16 %v610
      %v643 = vunpack.c.l.bf16 %v611
      %v644 = vunpack.c.l.bf16 %v612
      %v645 = vunpack.c.l.bf16 %v613
      %v646 = vunpack.c.l.bf16 %v614
      %v647 = vunpack.c.l.bf16 %v615
      %v648 = vunpack.c.l.bf16 %v616
      %v649 = vunpack.c.l.bf16 %v617
      %v650 = vunpack.c.l.bf16 %v618
      %v651 = vunpack.c.l.bf16 %v619
      %v652 = vunpack.c.l.bf16 %v620
      %v653 = vunpack.c.l.bf16 %v621
      %v654 = vunpack.c.l.bf16 %v622
      %v655 = vunpack.c.l.bf16 %v623
      %v656 = vunpack.c.l.bf16 %v624
      %v657 = vunpack.c.l.bf16 %v625
      %v658 = vunpack.c.l.bf16 %v626
      %v659 = vunpack.c.l.bf16 %v627
      %v660 = vunpack.c.l.bf16 %v628
      %v661 = vunpack.c.l.bf16 %v629
      %v662 = vunpack.c.l.bf16 %v630
      %v663 = vunpack.c.l.bf16 %v631
      %v664 = vunpack.c.l.bf16 %v632
      %v665 = vunpack.c.l.bf16 %v633
      %v666 = vunpack.c.l.bf16 %v634
      %v667 = vunpack.c.l.bf16 %v635
      %v668 = vmul.f32 %v572, %v636
      %v669 = vmul.f32 %v573, %v637
      %v670 = vmul.f32 %v574, %v638
      %v671 = vmul.f32 %v575, %v639
      %v672 = vmul.f32 %v576, %v640
      %v673 = vmul.f32 %v577, %v641
      %v674 = vmul.f32 %v578, %v642
      %v675 = vmul.f32 %v579, %v643
      %v676 = vmul.f32 %v580, %v644
      %v677 = vmul.f32 %v581, %v645
      %v678 = vmul.f32 %v582, %v646
      %v679 = vmul.f32 %v583, %v647
      %v680 = vmul.f32 %v584, %v648
      %v681 = vmul.f32 %v585, %v649
      %v682 = vmul.f32 %v586, %v650
      %v683 = vmul.f32 %v587, %v651
      %v684 = vmul.f32 %v588, %v652
      %v685 = vmul.f32 %v589, %v653
      %v686 = vmul.f32 %v590, %v654
      %v687 = vmul.f32 %v591, %v655
      %v688 = vmul.f32 %v592, %v656
      %v689 = vmul.f32 %v593, %v657
      %v690 = vmul.f32 %v594, %v658
      %v691 = vmul.f32 %v595, %v659
      %v692 = vmul.f32 %v596, %v660
      %v693 = vmul.f32 %v597, %v661
      %v694 = vmul.f32 %v598, %v662
      %v695 = vmul.f32 %v599, %v663
      %v696 = vmul.f32 %v600, %v664
      %v697 = vmul.f32 %v601, %v665
      %v698 = vmul.f32 %v602, %v666
      %v699 = vmul.f32 %v603, %v667
      %v700 = vld [vmem:[%s525] sm:$0xf]
      %v701 = vld [vmem:[%s525 + $0x4] sm:$0xf]
      %v702 = vld [vmem:[%s525 + $0x8] sm:$0xf]
      %v703 = vld [vmem:[%s525 + $0xc] sm:$0xf]
      %v704 = vld [vmem:[%s525 + $0x10] sm:$0xf]
      %v705 = vld [vmem:[%s525 + $0x14] sm:$0xf]
      %v706 = vld [vmem:[%s525 + $0x18] sm:$0xf]
      %v707 = vld [vmem:[%s525 + $0x1c] sm:$0xf]
      %v708 = vld [vmem:[%s525 + $0x20] sm:$0xf]
      %v709 = vld [vmem:[%s525 + $0x24] sm:$0xf]
      %v710 = vld [vmem:[%s525 + $0x28] sm:$0xf]
      %v711 = vld [vmem:[%s525 + $0x2c] sm:$0xf]
      %v712 = vld [vmem:[%s525 + $0x30] sm:$0xf]
      %v713 = vld [vmem:[%s525 + $0x34] sm:$0xf]
      %v714 = vld [vmem:[%s525 + $0x38] sm:$0xf]
      %v715 = vld [vmem:[%s525 + $0x3c] sm:$0xf]
      %v716 = vld [vmem:[%s525 + $0x40] sm:$0xf]
      %v717 = vld [vmem:[%s525 + $0x44] sm:$0xf]
      %v718 = vld [vmem:[%s525 + $0x48] sm:$0xf]
      %v719 = vld [vmem:[%s525 + $0x4c] sm:$0xf]
      %v720 = vld [vmem:[%s525 + $0x50] sm:$0xf]
      %v721 = vld [vmem:[%s525 + $0x54] sm:$0xf]
      %v722 = vld [vmem:[%s525 + $0x58] sm:$0xf]
      %v723 = vld [vmem:[%s525 + $0x5c] sm:$0xf]
      %v724 = vld [vmem:[%s525 + $0x60] sm:$0xf]
      %v725 = vld [vmem:[%s525 + $0x64] sm:$0xf]
      %v726 = vld [vmem:[%s525 + $0x68] sm:$0xf]
      %v727 = vld [vmem:[%s525 + $0x6c] sm:$0xf]
      %v728 = vld [vmem:[%s525 + $0x70] sm:$0xf]
      %v729 = vld [vmem:[%s525 + $0x74] sm:$0xf]
      %v730 = vld [vmem:[%s525 + $0x78] sm:$0xf]
      %v731 = vld [vmem:[%s525 + $0x7c] sm:$0xf]
      %v732 = vld [vmem:[%s4] sm:$0xf]
      %v733 = vld [vmem:[%s4 + $0x4] sm:$0xf]
      %v734 = vld [vmem:[%s4 + $0x8] sm:$0xf]
      %v735 = vld [vmem:[%s4 + $0xc] sm:$0xf]
      %v736 = vld [vmem:[%s531] sm:$0xf]
      %v737 = vld [vmem:[%s531 + $0x4] sm:$0xf]
      %v738 = vld [vmem:[%s531 + $0x8] sm:$0xf]
      %v739 = vld [vmem:[%s531 + $0xc] sm:$0xf]
      %v740 = vld [vmem:[%s531 + $0x10] sm:$0xf]
      %v741 = vld [vmem:[%s531 + $0x14] sm:$0xf]
      %v742 = vld [vmem:[%s531 + $0x18] sm:$0xf]
      %v743 = vld [vmem:[%s531 + $0x1c] sm:$0xf]
      %v744 = vld [vmem:[%s531 + $0x20] sm:$0xf]
      %v745 = vld [vmem:[%s531 + $0x24] sm:$0xf]
      %v746 = vld [vmem:[%s531 + $0x28] sm:$0xf]
      %v747 = vld [vmem:[%s531 + $0x2c] sm:$0xf]
      %v748 = vld [vmem:[%s531 + $0x30] sm:$0xf]
      %v749 = vld [vmem:[%s531 + $0x34] sm:$0xf]
      %v750 = vld [vmem:[%s531 + $0x38] sm:$0xf]
      %v751 = vld [vmem:[%s531 + $0x3c] sm:$0xf]
      %v752 = vld [vmem:[%s531 + $0x40] sm:$0xf]
      %v753 = vld [vmem:[%s531 + $0x44] sm:$0xf]
      %v754 = vld [vmem:[%s531 + $0x48] sm:$0xf]
      %v755 = vld [vmem:[%s531 + $0x4c] sm:$0xf]
      %v756 = vld [vmem:[%s531 + $0x50] sm:$0xf]
      %v757 = vld [vmem:[%s531 + $0x54] sm:$0xf]
      %v758 = vld [vmem:[%s531 + $0x58] sm:$0xf]
      %v759 = vld [vmem:[%s531 + $0x5c] sm:$0xf]
      %v760 = vld [vmem:[%s531 + $0x60] sm:$0xf]
      %v761 = vld [vmem:[%s531 + $0x64] sm:$0xf]
      %v762 = vld [vmem:[%s531 + $0x68] sm:$0xf]
      %v763 = vld [vmem:[%s531 + $0x6c] sm:$0xf]
      %v764 = vld [vmem:[%s531 + $0x70] sm:$0xf]
      %v765 = vld [vmem:[%s531 + $0x74] sm:$0xf]
      %v766 = vld [vmem:[%s531 + $0x78] sm:$0xf]
      %v767 = vld [vmem:[%s531 + $0x7c] sm:$0xf]
      %v768 = vld [vmem:[%s5] sm:$0xf]
      %v769 = vld [vmem:[%s5 + $0x4] sm:$0xf]
      %v770 = vld [vmem:[%s5 + $0x8] sm:$0xf]
      %v771 = vld [vmem:[%s5 + $0xc] sm:$0xf]
      %v804 = vunpack.c.l.b16 %v736
      %v805 = vunpack.c.l.b16 %v737
      %v806 = vunpack.c.l.b16 %v738
      %v807 = vunpack.c.l.b16 %v739
      %v808 = vunpack.c.l.b16 %v740
      %v809 = vunpack.c.l.b16 %v741
      %v810 = vunpack.c.l.b16 %v742
      %v811 = vunpack.c.l.b16 %v743
      %v812 = vunpack.c.l.b16 %v744
      %v813 = vunpack.c.l.b16 %v745
      %v814 = vunpack.c.l.b16 %v746
      %v815 = vunpack.c.l.b16 %v747
      %v816 = vunpack.c.l.b16 %v748
      %v817 = vunpack.c.l.b16 %v749
      %v818 = vunpack.c.l.b16 %v750
      %v819 = vunpack.c.l.b16 %v751
      %v820 = vunpack.c.l.b16 %v752
      %v821 = vunpack.c.l.b16 %v753
      %v822 = vunpack.c.l.b16 %v754
      %v823 = vunpack.c.l.b16 %v755
      %v824 = vunpack.c.l.b16 %v756
      %v825 = vunpack.c.l.b16 %v757
      %v826 = vunpack.c.l.b16 %v758
      %v827 = vunpack.c.l.b16 %v759
      %v828 = vunpack.c.l.b16 %v760
      %v829 = vunpack.c.l.b16 %v761
      %v830 = vunpack.c.l.b16 %v762
      %v831 = vunpack.c.l.b16 %v763
      %v832 = vunpack.c.l.b16 %v764
      %v833 = vunpack.c.l.b16 %v765
      %v834 = vunpack.c.l.b16 %v766
      %v835 = vunpack.c.l.b16 %v767
      %v836 = vpack.c.b16 %v805, %v804
      %v837 = vpack.c.b16 %v807, %v806
      %v838 = vpack.c.b16 %v809, %v808
      %v839 = vpack.c.b16 %v811, %v810
      %v840 = vpack.c.b16 %v813, %v812
      %v841 = vpack.c.b16 %v815, %v814
      %v842 = vpack.c.b16 %v817, %v816
      %v843 = vpack.c.b16 %v819, %v818
      %v844 = vpack.c.b16 %v821, %v820
      %v845 = vpack.c.b16 %v823, %v822
      %v846 = vpack.c.b16 %v825, %v824
      %v847 = vpack.c.b16 %v827, %v826
      %v848 = vpack.c.b16 %v829, %v828
      %v849 = vpack.c.b16 %v831, %v830
      %v850 = vpack.c.b16 %v833, %v832
      %v851 = vpack.c.b16 %v835, %v834
      %v856 = vunpack.c.l.b16 %v768
      %v857 = vunpack.c.l.b16 %v769
      %v858 = vunpack.c.l.b16 %v770
      %v859 = vunpack.c.l.b16 %v771
      %v860 = vpack.c.b16 %v857, %v856
      %v861 = vpack.c.b16 %v859, %v858
      %vm864 = vcmask 261120
      %v866 = vsel %vm864, %v836, 0
      %v869 = vsel %vm864, %v837, 0
      %v872 = vsel %vm864, %v838, 0
      %v875 = vsel %vm864, %v839, 0
      %v878 = vsel %vm864, %v840, 0
      %v881 = vsel %vm864, %v841, 0
      %v884 = vsel %vm864, %v842, 0
      %v887 = vsel %vm864, %v843, 0
      %v890 = vsel %vm864, %v844, 0
      %v893 = vsel %vm864, %v845, 0
      %v896 = vsel %vm864, %v846, 0
      %v899 = vsel %vm864, %v847, 0
      %v902 = vsel %vm864, %v848, 0
      %v905 = vsel %vm864, %v849, 0
      %v908 = vsel %vm864, %v850, 0
      %v911 = vsel %vm864, %v851, 0
      %913 = vmatprep.subr.bf16.mxu0 0
      %914 = vmatpush1.bf16.msra.mxu0 0
      %915 = vmatprep.subr.bf16.mxu0 0
      %916 = vmatpush1.bf16.msra.mxu0 0
      %917 = vmatprep.subr.bf16.mxu0 0
      %918 = vmatpush1.bf16.msra.mxu0 0
      %919 = vmatprep.subr.bf16.mxu0 0
      %920 = vmatpush1.bf16.msra.mxu0 0
      %921 = vmatprep.subr.bf16.mxu0 0
      %922 = vmatpush1.bf16.msra.mxu0 0
      %923 = vmatprep.subr.bf16.mxu0 0
      %924 = vmatpush1.bf16.msra.mxu0 0
      %925 = vmatprep.subr.bf16.mxu0 0
      %926 = vmatpush1.bf16.msra.mxu0 %v861
      %927 = vmatprep.subr.bf16.mxu0 0
      %928 = vmatpush1.bf16.msra.mxu0 %v860
      %929 = vmatprep.subr.bf16.mxu0 0
      %930 = vmatpush2.bf16.msra.mxu0 0
      %931 = vmatprep.subr.bf16.mxu0 0
      %932 = vmatpush2.bf16.msra.mxu0 0
      %933 = vmatprep.subr.bf16.mxu0 0
      %934 = vmatpush2.bf16.msra.mxu0 0
      %935 = vmatprep.subr.bf16.mxu0 0
      %936 = vmatpush2.bf16.msra.mxu0 0
      %937 = vmatprep.subr.bf16.mxu0 0
      %938 = vmatpush2.bf16.msra.mxu0 0
      %939 = vmatprep.subr.bf16.mxu0 0
      %940 = vmatpush2.bf16.msra.mxu0 0
      %941 = vmatprep.subr.bf16.mxu0 0
      %942 = vmatpush2.bf16.msra.mxu0 0
      %943 = vmatprep.subr.bf16.mxu0 0
      %944 = vmatpush2.bf16.msra.mxu0 0
      %945 = vmatprep.mubr.bf16.mxu0 0
      %946 = vmatmul.mubr.bf16.gmra.mxu0 %v866
      %v947 = vpop.f32.mrf.mxu0
      %v948 = vadd.f32 0.0, %v947
      %v949 = vpop.f32.mrf.mxu0
      %v950 = vpop.f32.mrf.mxu0
      %v951 = vadd.f32 0.0, %v950
      %v952 = vpop.f32.mrf.mxu0
      %953 = vmatprep.mubr.bf16.mxu0 0
      %954 = vmatmul.mubr.bf16.gmra.mxu0 %v869
      %v955 = vpop.f32.mrf.mxu0
      %v956 = vadd.f32 0.0, %v955
      %v957 = vpop.f32.mrf.mxu0
      %v958 = vpop.f32.mrf.mxu0
      %v959 = vadd.f32 0.0, %v958
      %v960 = vpop.f32.mrf.mxu0
      %961 = vmatprep.mubr.bf16.mxu0 0
      %962 = vmatmul.mubr.bf16.gmra.mxu0 %v872
      %v963 = vpop.f32.mrf.mxu0
      %v964 = vadd.f32 0.0, %v963
      %v965 = vpop.f32.mrf.mxu0
      %v966 = vpop.f32.mrf.mxu0
      %v967 = vadd.f32 0.0, %v966
      %v968 = vpop.f32.mrf.mxu0
      %969 = vmatprep.mubr.bf16.mxu0 0
      %970 = vmatmul.mubr.bf16.gmra.mxu0 %v875
      %v971 = vpop.f32.mrf.mxu0
      %v972 = vadd.f32 0.0, %v971
      %v973 = vpop.f32.mrf.mxu0
      %v974 = vpop.f32.mrf.mxu0
      %v975 = vadd.f32 0.0, %v974
      %v976 = vpop.f32.mrf.mxu0
      %977 = vmatprep.mubr.bf16.mxu0 0
      %978 = vmatmul.mubr.bf16.gmra.mxu0 %v878
      %v979 = vpop.f32.mrf.mxu0
      %v980 = vadd.f32 0.0, %v979
      %v981 = vpop.f32.mrf.mxu0
      %v982 = vpop.f32.mrf.mxu0
      %v983 = vadd.f32 0.0, %v982
      %v984 = vpop.f32.mrf.mxu0
      %985 = vmatprep.mubr.bf16.mxu0 0
      %986 = vmatmul.mubr.bf16.gmra.mxu0 %v881
      %v987 = vpop.f32.mrf.mxu0
      %v988 = vadd.f32 0.0, %v987
      %v989 = vpop.f32.mrf.mxu0
      %v990 = vpop.f32.mrf.mxu0
      %v991 = vadd.f32 0.0, %v990
      %v992 = vpop.f32.mrf.mxu0
      %993 = vmatprep.mubr.bf16.mxu0 0
      %994 = vmatmul.mubr.bf16.gmra.mxu0 %v884
      %v995 = vpop.f32.mrf.mxu0
      %v996 = vadd.f32 0.0, %v995
      %v997 = vpop.f32.mrf.mxu0
      %v998 = vpop.f32.mrf.mxu0
      %v999 = vadd.f32 0.0, %v998
      %v1000 = vpop.f32.mrf.mxu0
      %1001 = vmatprep.mubr.bf16.mxu0 0
      %1002 = vmatmul.mubr.bf16.gmra.mxu0 %v887
      %v1003 = vpop.f32.mrf.mxu0
      %v1004 = vadd.f32 0.0, %v1003
      %v1005 = vpop.f32.mrf.mxu0
      %v1006 = vpop.f32.mrf.mxu0
      %v1007 = vadd.f32 0.0, %v1006
      %v1008 = vpop.f32.mrf.mxu0
      %1009 = vmatprep.mubr.bf16.mxu0 0
      %1010 = vmatmul.mubr.bf16.gmra.mxu0 %v890
      %v1011 = vpop.f32.mrf.mxu0
      %v1012 = vadd.f32 0.0, %v1011
      %v1013 = vpop.f32.mrf.mxu0
      %v1014 = vpop.f32.mrf.mxu0
      %v1015 = vadd.f32 0.0, %v1014
      %v1016 = vpop.f32.mrf.mxu0
      %1017 = vmatprep.mubr.bf16.mxu0 0
      %1018 = vmatmul.mubr.bf16.gmra.mxu0 %v893
      %v1019 = vpop.f32.mrf.mxu0
      %v1020 = vadd.f32 0.0, %v1019
      %v1021 = vpop.f32.mrf.mxu0
      %v1022 = vpop.f32.mrf.mxu0
      %v1023 = vadd.f32 0.0, %v1022
      %v1024 = vpop.f32.mrf.mxu0
      %1025 = vmatprep.mubr.bf16.mxu0 0
      %1026 = vmatmul.mubr.bf16.gmra.mxu0 %v896
      %v1027 = vpop.f32.mrf.mxu0
      %v1028 = vadd.f32 0.0, %v1027
      %v1029 = vpop.f32.mrf.mxu0
      %v1030 = vpop.f32.mrf.mxu0
      %v1031 = vadd.f32 0.0, %v1030
      %v1032 = vpop.f32.mrf.mxu0
      %1033 = vmatprep.mubr.bf16.mxu0 0
      %1034 = vmatmul.mubr.bf16.gmra.mxu0 %v899
      %v1035 = vpop.f32.mrf.mxu0
      %v1036 = vadd.f32 0.0, %v1035
      %v1037 = vpop.f32.mrf.mxu0
      %v1038 = vpop.f32.mrf.mxu0
      %v1039 = vadd.f32 0.0, %v1038
      %v1040 = vpop.f32.mrf.mxu0
      %1041 = vmatprep.mubr.bf16.mxu0 0
      %1042 = vmatmul.mubr.bf16.gmra.mxu0 %v902
      %v1043 = vpop.f32.mrf.mxu0
      %v1044 = vadd.f32 0.0, %v1043
      %v1045 = vpop.f32.mrf.mxu0
      %v1046 = vpop.f32.mrf.mxu0
      %v1047 = vadd.f32 0.0, %v1046
      %v1048 = vpop.f32.mrf.mxu0
      %1049 = vmatprep.mubr.bf16.mxu0 0
      %1050 = vmatmul.mubr.bf16.gmra.mxu0 %v905
      %v1051 = vpop.f32.mrf.mxu0
      %v1052 = vadd.f32 0.0, %v1051
      %v1053 = vpop.f32.mrf.mxu0
      %v1054 = vpop.f32.mrf.mxu0
      %v1055 = vadd.f32 0.0, %v1054
      %v1056 = vpop.f32.mrf.mxu0
      %1057 = vmatprep.mubr.bf16.mxu0 0
      %1058 = vmatmul.mubr.bf16.gmra.mxu0 %v908
      %v1059 = vpop.f32.mrf.mxu0
      %v1060 = vadd.f32 0.0, %v1059
      %v1061 = vpop.f32.mrf.mxu0
      %v1062 = vpop.f32.mrf.mxu0
      %v1063 = vadd.f32 0.0, %v1062
      %v1064 = vpop.f32.mrf.mxu0
      %1065 = vmatprep.mubr.bf16.mxu0 0
      %1066 = vmatmul.mubr.bf16.gmra.mxu0 %v911
      %v1067 = vpop.f32.mrf.mxu0
      %v1068 = vadd.f32 0.0, %v1067
      %v1069 = vpop.f32.mrf.mxu0
      %v1070 = vpop.f32.mrf.mxu0
      %v1071 = vadd.f32 0.0, %v1070
      %v1072 = vpop.f32.mrf.mxu0
      %1073 = vdwg.mxu0
      %v1106 = vunpack.c.l.b16 %v700
      %v1107 = vunpack.c.l.b16 %v701
      %v1108 = vunpack.c.l.b16 %v702
      %v1109 = vunpack.c.l.b16 %v703
      %v1110 = vunpack.c.l.b16 %v704
      %v1111 = vunpack.c.l.b16 %v705
      %v1112 = vunpack.c.l.b16 %v706
      %v1113 = vunpack.c.l.b16 %v707
      %v1114 = vunpack.c.l.b16 %v708
      %v1115 = vunpack.c.l.b16 %v709
      %v1116 = vunpack.c.l.b16 %v710
      %v1117 = vunpack.c.l.b16 %v711
      %v1118 = vunpack.c.l.b16 %v712
      %v1119 = vunpack.c.l.b16 %v713
      %v1120 = vunpack.c.l.b16 %v714
      %v1121 = vunpack.c.l.b16 %v715
      %v1122 = vunpack.c.l.b16 %v716
      %v1123 = vunpack.c.l.b16 %v717
      %v1124 = vunpack.c.l.b16 %v718
      %v1125 = vunpack.c.l.b16 %v719
      %v1126 = vunpack.c.l.b16 %v720
      %v1127 = vunpack.c.l.b16 %v721
      %v1128 = vunpack.c.l.b16 %v722
      %v1129 = vunpack.c.l.b16 %v723
      %v1130 = vunpack.c.l.b16 %v724
      %v1131 = vunpack.c.l.b16 %v725
      %v1132 = vunpack.c.l.b16 %v726
      %v1133 = vunpack.c.l.b16 %v727
      %v1134 = vunpack.c.l.b16 %v728
      %v1135 = vunpack.c.l.b16 %v729
      %v1136 = vunpack.c.l.b16 %v730
      %v1137 = vunpack.c.l.b16 %v731
      %v1138 = vpack.c.b16 %v1107, %v1106
      %v1139 = vpack.c.b16 %v1109, %v1108
      %v1140 = vpack.c.b16 %v1111, %v1110
      %v1141 = vpack.c.b16 %v1113, %v1112
      %v1142 = vpack.c.b16 %v1115, %v1114
      %v1143 = vpack.c.b16 %v1117, %v1116
      %v1144 = vpack.c.b16 %v1119, %v1118
      %v1145 = vpack.c.b16 %v1121, %v1120
      %v1146 = vpack.c.b16 %v1123, %v1122
      %v1147 = vpack.c.b16 %v1125, %v1124
      %v1148 = vpack.c.b16 %v1127, %v1126
      %v1149 = vpack.c.b16 %v1129, %v1128
      %v1150 = vpack.c.b16 %v1131, %v1130
      %v1151 = vpack.c.b16 %v1133, %v1132
      %v1152 = vpack.c.b16 %v1135, %v1134
      %v1153 = vpack.c.b16 %v1137, %v1136
      %v1158 = vunpack.c.l.b16 %v732
      %v1159 = vunpack.c.l.b16 %v733
      %v1160 = vunpack.c.l.b16 %v734
      %v1161 = vunpack.c.l.b16 %v735
      %v1162 = vpack.c.b16 %v1159, %v1158
      %v1163 = vpack.c.b16 %v1161, %v1160
      %v1167 = vsel %vm864, %v1138, 0
      %v1170 = vsel %vm864, %v1139, 0
      %v1173 = vsel %vm864, %v1140, 0
      %v1176 = vsel %vm864, %v1141, 0
      %v1179 = vsel %vm864, %v1142, 0
      %v1182 = vsel %vm864, %v1143, 0
      %v1185 = vsel %vm864, %v1144, 0
      %v1188 = vsel %vm864, %v1145, 0
      %v1191 = vsel %vm864, %v1146, 0
      %v1194 = vsel %vm864, %v1147, 0
      %v1197 = vsel %vm864, %v1148, 0
      %v1200 = vsel %vm864, %v1149, 0
      %v1203 = vsel %vm864, %v1150, 0
      %v1206 = vsel %vm864, %v1151, 0
      %v1209 = vsel %vm864, %v1152, 0
      %v1212 = vsel %vm864, %v1153, 0
      %1214 = vmatprep.subr.bf16.mxu0 0
      %1215 = vmatpush1.bf16.msra.mxu0 0
      %1216 = vmatprep.subr.bf16.mxu0 0
      %1217 = vmatpush1.bf16.msra.mxu0 0
      %1218 = vmatprep.subr.bf16.mxu0 0
      %1219 = vmatpush1.bf16.msra.mxu0 0
      %1220 = vmatprep.subr.bf16.mxu0 0
      %1221 = vmatpush1.bf16.msra.mxu0 0
      %1222 = vmatprep.subr.bf16.mxu0 0
      %1223 = vmatpush1.bf16.msra.mxu0 0
      %1224 = vmatprep.subr.bf16.mxu0 0
      %1225 = vmatpush1.bf16.msra.mxu0 0
      %1226 = vmatprep.subr.bf16.mxu0 0
      %1227 = vmatpush1.bf16.msra.mxu0 %v1163
      %1228 = vmatprep.subr.bf16.mxu0 0
      %1229 = vmatpush1.bf16.msra.mxu0 %v1162
      %1230 = vmatprep.subr.bf16.mxu0 0
      %1231 = vmatpush2.bf16.msra.mxu0 0
      %1232 = vmatprep.subr.bf16.mxu0 0
      %1233 = vmatpush2.bf16.msra.mxu0 0
      %1234 = vmatprep.subr.bf16.mxu0 0
      %1235 = vmatpush2.bf16.msra.mxu0 0
      %1236 = vmatprep.subr.bf16.mxu0 0
      %1237 = vmatpush2.bf16.msra.mxu0 0
      %1238 = vmatprep.subr.bf16.mxu0 0
      %1239 = vmatpush2.bf16.msra.mxu0 0
      %1240 = vmatprep.subr.bf16.mxu0 0
      %1241 = vmatpush2.bf16.msra.mxu0 0
      %1242 = vmatprep.subr.bf16.mxu0 0
      %1243 = vmatpush2.bf16.msra.mxu0 0
      %1244 = vmatprep.subr.bf16.mxu0 0
      %1245 = vmatpush2.bf16.msra.mxu0 0
      %1246 = vmatprep.mubr.bf16.mxu0 0
      %1247 = vmatmul.mubr.bf16.gmra.mxu0 %v1167
      %v1248 = vpop.f32.mrf.mxu0
      %v1249 = vadd.f32 %v948, %v1248
      %v1250 = vpop.f32.mrf.mxu0
      %v1251 = vpop.f32.mrf.mxu0
      %v1252 = vadd.f32 %v951, %v1251
      %v1253 = vpop.f32.mrf.mxu0
      %1254 = vmatprep.mubr.bf16.mxu0 0
      %1255 = vmatmul.mubr.bf16.gmra.mxu0 %v1170
      %v1256 = vpop.f32.mrf.mxu0
      %v1257 = vadd.f32 %v956, %v1256
      %v1258 = vpop.f32.mrf.mxu0
      %v1259 = vpop.f32.mrf.mxu0
      %v1260 = vadd.f32 %v959, %v1259
      %v1261 = vpop.f32.mrf.mxu0
      %1262 = vmatprep.mubr.bf16.mxu0 0
      %1263 = vmatmul.mubr.bf16.gmra.mxu0 %v1173
      %v1264 = vpop.f32.mrf.mxu0
      %v1265 = vadd.f32 %v964, %v1264
      %v1266 = vpop.f32.mrf.mxu0
      %v1267 = vpop.f32.mrf.mxu0
      %v1268 = vadd.f32 %v967, %v1267
      %v1269 = vpop.f32.mrf.mxu0
      %1270 = vmatprep.mubr.bf16.mxu0 0
      %1271 = vmatmul.mubr.bf16.gmra.mxu0 %v1176
      %v1272 = vpop.f32.mrf.mxu0
      %v1273 = vadd.f32 %v972, %v1272
      %v1274 = vpop.f32.mrf.mxu0
      %v1275 = vpop.f32.mrf.mxu0
      %v1276 = vadd.f32 %v975, %v1275
      %v1277 = vpop.f32.mrf.mxu0
      %1278 = vmatprep.mubr.bf16.mxu0 0
      %1279 = vmatmul.mubr.bf16.gmra.mxu0 %v1179
      %v1280 = vpop.f32.mrf.mxu0
      %v1281 = vadd.f32 %v980, %v1280
      %v1282 = vpop.f32.mrf.mxu0
      %v1283 = vpop.f32.mrf.mxu0
      %v1284 = vadd.f32 %v983, %v1283
      %v1285 = vpop.f32.mrf.mxu0
      %1286 = vmatprep.mubr.bf16.mxu0 0
      %1287 = vmatmul.mubr.bf16.gmra.mxu0 %v1182
      %v1288 = vpop.f32.mrf.mxu0
      %v1289 = vadd.f32 %v988, %v1288
      %v1290 = vpop.f32.mrf.mxu0
      %v1291 = vpop.f32.mrf.mxu0
      %v1292 = vadd.f32 %v991, %v1291
      %v1293 = vpop.f32.mrf.mxu0
      %1294 = vmatprep.mubr.bf16.mxu0 0
      %1295 = vmatmul.mubr.bf16.gmra.mxu0 %v1185
      %v1296 = vpop.f32.mrf.mxu0
      %v1297 = vadd.f32 %v996, %v1296
      %v1298 = vpop.f32.mrf.mxu0
      %v1299 = vpop.f32.mrf.mxu0
      %v1300 = vadd.f32 %v999, %v1299
      %v1301 = vpop.f32.mrf.mxu0
      %1302 = vmatprep.mubr.bf16.mxu0 0
      %1303 = vmatmul.mubr.bf16.gmra.mxu0 %v1188
      %v1304 = vpop.f32.mrf.mxu0
      %v1305 = vadd.f32 %v1004, %v1304
      %v1306 = vpop.f32.mrf.mxu0
      %v1307 = vpop.f32.mrf.mxu0
      %v1308 = vadd.f32 %v1007, %v1307
      %v1309 = vpop.f32.mrf.mxu0
      %1310 = vmatprep.mubr.bf16.mxu0 0
      %1311 = vmatmul.mubr.bf16.gmra.mxu0 %v1191
      %v1312 = vpop.f32.mrf.mxu0
      %v1313 = vadd.f32 %v1012, %v1312
      %v1314 = vpop.f32.mrf.mxu0
      %v1315 = vpop.f32.mrf.mxu0
      %v1316 = vadd.f32 %v1015, %v1315
      %v1317 = vpop.f32.mrf.mxu0
      %1318 = vmatprep.mubr.bf16.mxu0 0
      %1319 = vmatmul.mubr.bf16.gmra.mxu0 %v1194
      %v1320 = vpop.f32.mrf.mxu0
      %v1321 = vadd.f32 %v1020, %v1320
      %v1322 = vpop.f32.mrf.mxu0
      %v1323 = vpop.f32.mrf.mxu0
      %v1324 = vadd.f32 %v1023, %v1323
      %v1325 = vpop.f32.mrf.mxu0
      %1326 = vmatprep.mubr.bf16.mxu0 0
      %1327 = vmatmul.mubr.bf16.gmra.mxu0 %v1197
      %v1328 = vpop.f32.mrf.mxu0
      %v1329 = vadd.f32 %v1028, %v1328
      %v1330 = vpop.f32.mrf.mxu0
      %v1331 = vpop.f32.mrf.mxu0
      %v1332 = vadd.f32 %v1031, %v1331
      %v1333 = vpop.f32.mrf.mxu0
      %1334 = vmatprep.mubr.bf16.mxu0 0
      %1335 = vmatmul.mubr.bf16.gmra.mxu0 %v1200
      %v1336 = vpop.f32.mrf.mxu0
      %v1337 = vadd.f32 %v1036, %v1336
      %v1338 = vpop.f32.mrf.mxu0
      %v1339 = vpop.f32.mrf.mxu0
      %v1340 = vadd.f32 %v1039, %v1339
      %v1341 = vpop.f32.mrf.mxu0
      %1342 = vmatprep.mubr.bf16.mxu0 0
      %1343 = vmatmul.mubr.bf16.gmra.mxu0 %v1203
      %v1344 = vpop.f32.mrf.mxu0
      %v1345 = vadd.f32 %v1044, %v1344
      %v1346 = vpop.f32.mrf.mxu0
      %v1347 = vpop.f32.mrf.mxu0
      %v1348 = vadd.f32 %v1047, %v1347
      %v1349 = vpop.f32.mrf.mxu0
      %1350 = vmatprep.mubr.bf16.mxu0 0
      %1351 = vmatmul.mubr.bf16.gmra.mxu0 %v1206
      %v1352 = vpop.f32.mrf.mxu0
      %v1353 = vadd.f32 %v1052, %v1352
      %v1354 = vpop.f32.mrf.mxu0
      %v1355 = vpop.f32.mrf.mxu0
      %v1356 = vadd.f32 %v1055, %v1355
      %v1357 = vpop.f32.mrf.mxu0
      %1358 = vmatprep.mubr.bf16.mxu0 0
      %1359 = vmatmul.mubr.bf16.gmra.mxu0 %v1209
      %v1360 = vpop.f32.mrf.mxu0
      %v1361 = vadd.f32 %v1060, %v1360
      %v1362 = vpop.f32.mrf.mxu0
      %v1363 = vpop.f32.mrf.mxu0
      %v1364 = vadd.f32 %v1063, %v1363
      %v1365 = vpop.f32.mrf.mxu0
      %1366 = vmatprep.mubr.bf16.mxu0 0
      %1367 = vmatmul.mubr.bf16.gmra.mxu0 %v1212
      %v1368 = vpop.f32.mrf.mxu0
      %v1369 = vadd.f32 %v1068, %v1368
      %v1370 = vpop.f32.mrf.mxu0
      %v1371 = vpop.f32.mrf.mxu0
      %v1372 = vadd.f32 %v1071, %v1371
      %v1373 = vpop.f32.mrf.mxu0
      %1374 = vdwg.mxu0
      %v1375 = vld [vmem:[%s6] sm:$0x1]
      %v1377 = vlaneseq
      %v1378 = vshrl.u32 %v1377, 7
      %v1379 = vsub.s32 0, %v1378
      %v1380 = vrot.slane %v1375, %v1379
      %v1382 = vadd.f32 %v1249, %v1380
      %v1383 = vadd.f32 %v1252, %v1380
      %v1384 = vadd.f32 %v1257, %v1380
      %v1385 = vadd.f32 %v1260, %v1380
      %v1386 = vadd.f32 %v1265, %v1380
      %v1387 = vadd.f32 %v1268, %v1380
      %v1388 = vadd.f32 %v1273, %v1380
      %v1389 = vadd.f32 %v1276, %v1380
      %v1390 = vadd.f32 %v1281, %v1380
      %v1391 = vadd.f32 %v1284, %v1380
      %v1392 = vadd.f32 %v1289, %v1380
      %v1393 = vadd.f32 %v1292, %v1380
      %v1394 = vadd.f32 %v1297, %v1380
      %v1395 = vadd.f32 %v1300, %v1380
      %v1396 = vadd.f32 %v1305, %v1380
      %v1397 = vadd.f32 %v1308, %v1380
      %v1398 = vadd.f32 %v1313, %v1380
      %v1399 = vadd.f32 %v1316, %v1380
      %v1400 = vadd.f32 %v1321, %v1380
      %v1401 = vadd.f32 %v1324, %v1380
      %v1402 = vadd.f32 %v1329, %v1380
      %v1403 = vadd.f32 %v1332, %v1380
      %v1404 = vadd.f32 %v1337, %v1380
      %v1405 = vadd.f32 %v1340, %v1380
      %v1406 = vadd.f32 %v1345, %v1380
      %v1407 = vadd.f32 %v1348, %v1380
      %v1408 = vadd.f32 %v1353, %v1380
      %v1409 = vadd.f32 %v1356, %v1380
      %v1410 = vadd.f32 %v1361, %v1380
      %v1411 = vadd.f32 %v1364, %v1380
      %v1412 = vadd.f32 %v1369, %v1380
      %v1413 = vadd.f32 %v1372, %v1380
      %v1414 = vmax.f32 %v1382, 0.0
      %v1415 = vmax.f32 %v1383, 0.0
      %v1416 = vmax.f32 %v1384, 0.0
      %v1417 = vmax.f32 %v1385, 0.0
      %v1418 = vmax.f32 %v1386, 0.0
      %v1419 = vmax.f32 %v1387, 0.0
      %v1420 = vmax.f32 %v1388, 0.0
      %v1421 = vmax.f32 %v1389, 0.0
      %v1422 = vmax.f32 %v1390, 0.0
      %v1423 = vmax.f32 %v1391, 0.0
      %v1424 = vmax.f32 %v1392, 0.0
      %v1425 = vmax.f32 %v1393, 0.0
      %v1426 = vmax.f32 %v1394, 0.0
      %v1427 = vmax.f32 %v1395, 0.0
      %v1428 = vmax.f32 %v1396, 0.0
      %v1429 = vmax.f32 %v1397, 0.0
      %v1430 = vmax.f32 %v1398, 0.0
      %v1431 = vmax.f32 %v1399, 0.0
      %v1432 = vmax.f32 %v1400, 0.0
      %v1433 = vmax.f32 %v1401, 0.0
      %v1434 = vmax.f32 %v1402, 0.0
      %v1435 = vmax.f32 %v1403, 0.0
      %v1436 = vmax.f32 %v1404, 0.0
      %v1437 = vmax.f32 %v1405, 0.0
      %v1438 = vmax.f32 %v1406, 0.0
      %v1439 = vmax.f32 %v1407, 0.0
      %v1440 = vmax.f32 %v1408, 0.0
      %v1441 = vmax.f32 %v1409, 0.0
      %v1442 = vmax.f32 %v1410, 0.0
      %v1443 = vmax.f32 %v1411, 0.0
      %v1444 = vmax.f32 %v1412, 0.0
      %v1445 = vmax.f32 %v1413, 0.0
      %v1446 = vpack.c.bf16 %v1415, %v1414
      %v1447 = vpack.c.bf16 %v1417, %v1416
      %v1448 = vpack.c.bf16 %v1419, %v1418
      %v1449 = vpack.c.bf16 %v1421, %v1420
      %v1450 = vpack.c.bf16 %v1423, %v1422
      %v1451 = vpack.c.bf16 %v1425, %v1424
      %v1452 = vpack.c.bf16 %v1427, %v1426
      %v1453 = vpack.c.bf16 %v1429, %v1428
      %v1454 = vpack.c.bf16 %v1431, %v1430
      %v1455 = vpack.c.bf16 %v1433, %v1432
      %v1456 = vpack.c.bf16 %v1435, %v1434
      %v1457 = vpack.c.bf16 %v1437, %v1436
      %v1458 = vpack.c.bf16 %v1439, %v1438
      %v1459 = vpack.c.bf16 %v1441, %v1440
      %v1460 = vpack.c.bf16 %v1443, %v1442
      %v1461 = vpack.c.bf16 %v1445, %v1444
      %v1462 = vld [vmem:[%s7] sm:$0xf]
      %v1463 = vld [vmem:[%s7 + $0x4] sm:$0xf]
      %v1464 = vld [vmem:[%s7 + $0x8] sm:$0xf]
      %v1465 = vld [vmem:[%s7 + $0xc] sm:$0xf]
      %v1466 = vld [vmem:[%s7 + $0x10] sm:$0xf]
      %v1467 = vld [vmem:[%s7 + $0x14] sm:$0xf]
      %v1468 = vld [vmem:[%s7 + $0x18] sm:$0xf]
      %v1469 = vld [vmem:[%s7 + $0x1c] sm:$0xf]
      %v1470 = vld [vmem:[%s7 + $0x20] sm:$0xf]
      %v1471 = vld [vmem:[%s7 + $0x24] sm:$0xf]
      %v1472 = vld [vmem:[%s7 + $0x28] sm:$0xf]
      %v1473 = vld [vmem:[%s7 + $0x2c] sm:$0xf]
      %v1474 = vld [vmem:[%s7 + $0x30] sm:$0xf]
      %v1475 = vld [vmem:[%s7 + $0x34] sm:$0xf]
      %v1476 = vld [vmem:[%s7 + $0x38] sm:$0xf]
      %v1477 = vld [vmem:[%s7 + $0x3c] sm:$0xf]
      %v1478 = vld [vmem:[%s8] sm:$0x1]
      %v1480 = vlaneseq
      %v1481 = vshrl.u32 %v1480, 7
      %v1482 = vsub.s32 0, %v1481
      %v1483 = vrot.slane %v1478, %v1482
      %v1501 = vunpack.c.l.b16 %v1462
      %v1502 = vunpack.c.l.b16 %v1463
      %v1503 = vunpack.c.l.b16 %v1464
      %v1504 = vunpack.c.l.b16 %v1465
      %v1505 = vunpack.c.l.b16 %v1466
      %v1506 = vunpack.c.l.b16 %v1467
      %v1507 = vunpack.c.l.b16 %v1468
      %v1508 = vunpack.c.l.b16 %v1469
      %v1509 = vunpack.c.l.b16 %v1470
      %v1510 = vunpack.c.l.b16 %v1471
      %v1511 = vunpack.c.l.b16 %v1472
      %v1512 = vunpack.c.l.b16 %v1473
      %v1513 = vunpack.c.l.b16 %v1474
      %v1514 = vunpack.c.l.b16 %v1475
      %v1515 = vunpack.c.l.b16 %v1476
      %v1516 = vunpack.c.l.b16 %v1477
      %v1517 = vpack.c.b16 %v1502, %v1501
      %v1518 = vpack.c.b16 %v1504, %v1503
      %v1519 = vpack.c.b16 %v1506, %v1505
      %v1520 = vpack.c.b16 %v1508, %v1507
      %v1521 = vpack.c.b16 %v1510, %v1509
      %v1522 = vpack.c.b16 %v1512, %v1511
      %v1523 = vpack.c.b16 %v1514, %v1513
      %v1524 = vpack.c.b16 %v1516, %v1515
      %1533 = vmatprep.subr.bf16.mxu0 0
      %1534 = vmatpush1.bf16.msra.mxu0 %v1524
      %1535 = vmatprep.subr.bf16.mxu0 0
      %1536 = vmatpush1.bf16.msra.mxu0 %v1523
      %1537 = vmatprep.subr.bf16.mxu0 0
      %1538 = vmatpush1.bf16.msra.mxu0 %v1522
      %1539 = vmatprep.subr.bf16.mxu0 0
      %1540 = vmatpush1.bf16.msra.mxu0 %v1521
      %1541 = vmatprep.subr.bf16.mxu0 0
      %1542 = vmatpush1.bf16.msra.mxu0 %v1520
      %1543 = vmatprep.subr.bf16.mxu0 0
      %1544 = vmatpush1.bf16.msra.mxu0 %v1519
      %1545 = vmatprep.subr.bf16.mxu0 0
      %1546 = vmatpush1.bf16.msra.mxu0 %v1518
      %1547 = vmatprep.subr.bf16.mxu0 0
      %1548 = vmatpush1.bf16.msra.mxu0 %v1517
      %1549 = vmatprep.subr.bf16.mxu0 0
      %1550 = vmatpush2.bf16.msra.mxu0 0
      %1551 = vmatprep.subr.bf16.mxu0 0
      %1552 = vmatpush2.bf16.msra.mxu0 0
      %1553 = vmatprep.subr.bf16.mxu0 0
      %1554 = vmatpush2.bf16.msra.mxu0 0
      %1555 = vmatprep.subr.bf16.mxu0 0
      %1556 = vmatpush2.bf16.msra.mxu0 0
      %1557 = vmatprep.subr.bf16.mxu0 0
      %1558 = vmatpush2.bf16.msra.mxu0 0
      %1559 = vmatprep.subr.bf16.mxu0 0
      %1560 = vmatpush2.bf16.msra.mxu0 0
      %1561 = vmatprep.subr.bf16.mxu0 0
      %1562 = vmatpush2.bf16.msra.mxu0 0
      %1563 = vmatprep.subr.bf16.mxu0 0
      %1564 = vmatpush2.bf16.msra.mxu0 0
      %1565 = vmatprep.mubr.bf16.mxu0 0
      %1566 = vmatmul.mubr.bf16.gmra.mxu0 %v1446
      %v1567 = vpop.f32.mrf.mxu0
      %v1568 = vadd.f32 %v1483, %v1567
      %v1569 = vpop.f32.mrf.mxu0
      %v1570 = vpop.f32.mrf.mxu0
      %v1571 = vadd.f32 %v1483, %v1570
      %v1572 = vpop.f32.mrf.mxu0
      %1573 = vmatprep.mubr.bf16.mxu0 0
      %1574 = vmatmul.mubr.bf16.gmra.mxu0 %v1447
      %v1575 = vpop.f32.mrf.mxu0
      %v1576 = vadd.f32 %v1483, %v1575
      %v1577 = vpop.f32.mrf.mxu0
      %v1578 = vpop.f32.mrf.mxu0
      %v1579 = vadd.f32 %v1483, %v1578
      %v1580 = vpop.f32.mrf.mxu0
      %1581 = vmatprep.mubr.bf16.mxu0 0
      %1582 = vmatmul.mubr.bf16.gmra.mxu0 %v1448
      %v1583 = vpop.f32.mrf.mxu0
      %v1584 = vadd.f32 %v1483, %v1583
      %v1585 = vpop.f32.mrf.mxu0
      %v1586 = vpop.f32.mrf.mxu0
      %v1587 = vadd.f32 %v1483, %v1586
      %v1588 = vpop.f32.mrf.mxu0
      %1589 = vmatprep.mubr.bf16.mxu0 0
      %1590 = vmatmul.mubr.bf16.gmra.mxu0 %v1449
      %v1591 = vpop.f32.mrf.mxu0
      %v1592 = vadd.f32 %v1483, %v1591
      %v1593 = vpop.f32.mrf.mxu0
      %v1594 = vpop.f32.mrf.mxu0
      %v1595 = vadd.f32 %v1483, %v1594
      %v1596 = vpop.f32.mrf.mxu0
      %1597 = vmatprep.mubr.bf16.mxu0 0
      %1598 = vmatmul.mubr.bf16.gmra.mxu0 %v1450
      %v1599 = vpop.f32.mrf.mxu0
      %v1600 = vadd.f32 %v1483, %v1599
      %v1601 = vpop.f32.mrf.mxu0
      %v1602 = vpop.f32.mrf.mxu0
      %v1603 = vadd.f32 %v1483, %v1602
      %v1604 = vpop.f32.mrf.mxu0
      %1605 = vmatprep.mubr.bf16.mxu0 0
      %1606 = vmatmul.mubr.bf16.gmra.mxu0 %v1451
      %v1607 = vpop.f32.mrf.mxu0
      %v1608 = vadd.f32 %v1483, %v1607
      %v1609 = vpop.f32.mrf.mxu0
      %v1610 = vpop.f32.mrf.mxu0
      %v1611 = vadd.f32 %v1483, %v1610
      %v1612 = vpop.f32.mrf.mxu0
      %1613 = vmatprep.mubr.bf16.mxu0 0
      %1614 = vmatmul.mubr.bf16.gmra.mxu0 %v1452
      %v1615 = vpop.f32.mrf.mxu0
      %v1616 = vadd.f32 %v1483, %v1615
      %v1617 = vpop.f32.mrf.mxu0
      %v1618 = vpop.f32.mrf.mxu0
      %v1619 = vadd.f32 %v1483, %v1618
      %v1620 = vpop.f32.mrf.mxu0
      %1621 = vmatprep.mubr.bf16.mxu0 0
      %1622 = vmatmul.mubr.bf16.gmra.mxu0 %v1453
      %v1623 = vpop.f32.mrf.mxu0
      %v1624 = vadd.f32 %v1483, %v1623
      %v1625 = vpop.f32.mrf.mxu0
      %v1626 = vpop.f32.mrf.mxu0
      %v1627 = vadd.f32 %v1483, %v1626
      %v1628 = vpop.f32.mrf.mxu0
      %1629 = vmatprep.mubr.bf16.mxu0 0
      %1630 = vmatmul.mubr.bf16.gmra.mxu0 %v1454
      %v1631 = vpop.f32.mrf.mxu0
      %v1632 = vadd.f32 %v1483, %v1631
      %v1633 = vpop.f32.mrf.mxu0
      %v1634 = vpop.f32.mrf.mxu0
      %v1635 = vadd.f32 %v1483, %v1634
      %v1636 = vpop.f32.mrf.mxu0
      %1637 = vmatprep.mubr.bf16.mxu0 0
      %1638 = vmatmul.mubr.bf16.gmra.mxu0 %v1455
      %v1639 = vpop.f32.mrf.mxu0
      %v1640 = vadd.f32 %v1483, %v1639
      %v1641 = vpop.f32.mrf.mxu0
      %v1642 = vpop.f32.mrf.mxu0
      %v1643 = vadd.f32 %v1483, %v1642
      %v1644 = vpop.f32.mrf.mxu0
      %1645 = vmatprep.mubr.bf16.mxu0 0
      %1646 = vmatmul.mubr.bf16.gmra.mxu0 %v1456
      %v1647 = vpop.f32.mrf.mxu0
      %v1648 = vadd.f32 %v1483, %v1647
      %v1649 = vpop.f32.mrf.mxu0
      %v1650 = vpop.f32.mrf.mxu0
      %v1651 = vadd.f32 %v1483, %v1650
      %v1652 = vpop.f32.mrf.mxu0
      %1653 = vmatprep.mubr.bf16.mxu0 0
      %1654 = vmatmul.mubr.bf16.gmra.mxu0 %v1457
      %v1655 = vpop.f32.mrf.mxu0
      %v1656 = vadd.f32 %v1483, %v1655
      %v1657 = vpop.f32.mrf.mxu0
      %v1658 = vpop.f32.mrf.mxu0
      %v1659 = vadd.f32 %v1483, %v1658
      %v1660 = vpop.f32.mrf.mxu0
      %1661 = vmatprep.mubr.bf16.mxu0 0
      %1662 = vmatmul.mubr.bf16.gmra.mxu0 %v1458
      %v1663 = vpop.f32.mrf.mxu0
      %v1664 = vadd.f32 %v1483, %v1663
      %v1665 = vpop.f32.mrf.mxu0
      %v1666 = vpop.f32.mrf.mxu0
      %v1667 = vadd.f32 %v1483, %v1666
      %v1668 = vpop.f32.mrf.mxu0
      %1669 = vmatprep.mubr.bf16.mxu0 0
      %1670 = vmatmul.mubr.bf16.gmra.mxu0 %v1459
      %v1671 = vpop.f32.mrf.mxu0
      %v1672 = vadd.f32 %v1483, %v1671
      %v1673 = vpop.f32.mrf.mxu0
      %v1674 = vpop.f32.mrf.mxu0
      %v1675 = vadd.f32 %v1483, %v1674
      %v1676 = vpop.f32.mrf.mxu0
      %1677 = vmatprep.mubr.bf16.mxu0 0
      %1678 = vmatmul.mubr.bf16.gmra.mxu0 %v1460
      %v1679 = vpop.f32.mrf.mxu0
      %v1680 = vadd.f32 %v1483, %v1679
      %v1681 = vpop.f32.mrf.mxu0
      %v1682 = vpop.f32.mrf.mxu0
      %v1683 = vadd.f32 %v1483, %v1682
      %v1684 = vpop.f32.mrf.mxu0
      %1685 = vmatprep.mubr.bf16.mxu0 0
      %1686 = vmatmul.mubr.bf16.gmra.mxu0 %v1461
      %v1687 = vpop.f32.mrf.mxu0
      %v1688 = vadd.f32 %v1483, %v1687
      %v1689 = vpop.f32.mrf.mxu0
      %v1690 = vpop.f32.mrf.mxu0
      %v1691 = vadd.f32 %v1483, %v1690
      %v1692 = vpop.f32.mrf.mxu0
      %1693 = vdwg.mxu0
      %v1694 = vmax.f32 %v1568, 0.0
      %v1695 = vmax.f32 %v1571, 0.0
      %v1696 = vmax.f32 %v1576, 0.0
      %v1697 = vmax.f32 %v1579, 0.0
      %v1698 = vmax.f32 %v1584, 0.0
      %v1699 = vmax.f32 %v1587, 0.0
      %v1700 = vmax.f32 %v1592, 0.0
      %v1701 = vmax.f32 %v1595, 0.0
      %v1702 = vmax.f32 %v1600, 0.0
      %v1703 = vmax.f32 %v1603, 0.0
      %v1704 = vmax.f32 %v1608, 0.0
      %v1705 = vmax.f32 %v1611, 0.0
      %v1706 = vmax.f32 %v1616, 0.0
      %v1707 = vmax.f32 %v1619, 0.0
      %v1708 = vmax.f32 %v1624, 0.0
      %v1709 = vmax.f32 %v1627, 0.0
      %v1710 = vmax.f32 %v1632, 0.0
      %v1711 = vmax.f32 %v1635, 0.0
      %v1712 = vmax.f32 %v1640, 0.0
      %v1713 = vmax.f32 %v1643, 0.0
      %v1714 = vmax.f32 %v1648, 0.0
      %v1715 = vmax.f32 %v1651, 0.0
      %v1716 = vmax.f32 %v1656, 0.0
      %v1717 = vmax.f32 %v1659, 0.0
      %v1718 = vmax.f32 %v1664, 0.0
      %v1719 = vmax.f32 %v1667, 0.0
      %v1720 = vmax.f32 %v1672, 0.0
      %v1721 = vmax.f32 %v1675, 0.0
      %v1722 = vmax.f32 %v1680, 0.0
      %v1723 = vmax.f32 %v1683, 0.0
      %v1724 = vmax.f32 %v1688, 0.0
      %v1725 = vmax.f32 %v1691, 0.0
      %v1726 = vpack.c.bf16 %v1695, %v1694
      %v1727 = vpack.c.bf16 %v1697, %v1696
      %v1728 = vpack.c.bf16 %v1699, %v1698
      %v1729 = vpack.c.bf16 %v1701, %v1700
      %v1730 = vpack.c.bf16 %v1703, %v1702
      %v1731 = vpack.c.bf16 %v1705, %v1704
      %v1732 = vpack.c.bf16 %v1707, %v1706
      %v1733 = vpack.c.bf16 %v1709, %v1708
      %v1734 = vpack.c.bf16 %v1711, %v1710
      %v1735 = vpack.c.bf16 %v1713, %v1712
      %v1736 = vpack.c.bf16 %v1715, %v1714
      %v1737 = vpack.c.bf16 %v1717, %v1716
      %v1738 = vpack.c.bf16 %v1719, %v1718
      %v1739 = vpack.c.bf16 %v1721, %v1720
      %v1740 = vpack.c.bf16 %v1723, %v1722
      %v1741 = vpack.c.bf16 %v1725, %v1724
      %v1742 = vld [vmem:[%s9] sm:$0xf]
      %v1743 = vld [vmem:[%s9 + $0x4] sm:$0xf]
      %v1744 = vld [vmem:[%s9 + $0x8] sm:$0xf]
      %v1745 = vld [vmem:[%s9 + $0xc] sm:$0xf]
      %v1746 = vld [vmem:[%s9 + $0x10] sm:$0xf]
      %v1747 = vld [vmem:[%s9 + $0x14] sm:$0xf]
      %v1748 = vld [vmem:[%s9 + $0x18] sm:$0xf]
      %v1749 = vld [vmem:[%s9 + $0x1c] sm:$0xf]
      %v1750 = vld [vmem:[%s10] sm:$0x1]
      %v1752 = vlaneseq
      %v1753 = vshrl.u32 %v1752, 7
      %v1754 = vsub.s32 0, %v1753
      %v1755 = vrot.slane %v1750, %v1754
      %v1765 = vunpack.c.l.b16 %v1742
      %v1766 = vunpack.c.l.b16 %v1743
      %v1767 = vunpack.c.l.b16 %v1744
      %v1768 = vunpack.c.l.b16 %v1745
      %v1769 = vunpack.c.l.b16 %v1746
      %v1770 = vunpack.c.l.b16 %v1747
      %v1771 = vunpack.c.l.b16 %v1748
      %v1772 = vunpack.c.l.b16 %v1749
      %v1773 = vpack.c.b16 %v1766, %v1765
      %v1774 = vpack.c.b16 %v1768, %v1767
      %v1775 = vpack.c.b16 %v1770, %v1769
      %v1776 = vpack.c.b16 %v1772, %v1771
      %vm1781 = vcmask 523264
      %v1783 = vsel %vm1781, %v1726, 0
      %v1786 = vsel %vm1781, %v1727, 0
      %v1789 = vsel %vm1781, %v1728, 0
      %v1792 = vsel %vm1781, %v1729, 0
      %v1795 = vsel %vm1781, %v1730, 0
      %v1798 = vsel %vm1781, %v1731, 0
      %v1801 = vsel %vm1781, %v1732, 0
      %v1804 = vsel %vm1781, %v1733, 0
      %v1807 = vsel %vm1781, %v1734, 0
      %v1810 = vsel %vm1781, %v1735, 0
      %v1813 = vsel %vm1781, %v1736, 0
      %v1816 = vsel %vm1781, %v1737, 0
      %v1819 = vsel %vm1781, %v1738, 0
      %v1822 = vsel %vm1781, %v1739, 0
      %v1825 = vsel %vm1781, %v1740, 0
      %v1828 = vsel %vm1781, %v1741, 0
      %1830 = vmatprep.subr.bf16.mxu0 0
      %1831 = vmatpush1.bf16.msra.mxu0 0
      %1832 = vmatprep.subr.bf16.mxu0 0
      %1833 = vmatpush1.bf16.msra.mxu0 0
      %1834 = vmatprep.subr.bf16.mxu0 0
      %1835 = vmatpush1.bf16.msra.mxu0 0
      %1836 = vmatprep.subr.bf16.mxu0 0
      %1837 = vmatpush1.bf16.msra.mxu0 0
      %1838 = vmatprep.subr.bf16.mxu0 0
      %1839 = vmatpush1.bf16.msra.mxu0 %v1776
      %1840 = vmatprep.subr.bf16.mxu0 0
      %1841 = vmatpush1.bf16.msra.mxu0 %v1775
      %1842 = vmatprep.subr.bf16.mxu0 0
      %1843 = vmatpush1.bf16.msra.mxu0 %v1774
      %1844 = vmatprep.subr.bf16.mxu0 0
      %1845 = vmatpush1.bf16.msra.mxu0 %v1773
      %1846 = vmatprep.subr.bf16.mxu0 0
      %1847 = vmatpush2.bf16.msra.mxu0 0
      %1848 = vmatprep.subr.bf16.mxu0 0
      %1849 = vmatpush2.bf16.msra.mxu0 0
      %1850 = vmatprep.subr.bf16.mxu0 0
      %1851 = vmatpush2.bf16.msra.mxu0 0
      %1852 = vmatprep.subr.bf16.mxu0 0
      %1853 = vmatpush2.bf16.msra.mxu0 0
      %1854 = vmatprep.subr.bf16.mxu0 0
      %1855 = vmatpush2.bf16.msra.mxu0 0
      %1856 = vmatprep.subr.bf16.mxu0 0
      %1857 = vmatpush2.bf16.msra.mxu0 0
      %1858 = vmatprep.subr.bf16.mxu0 0
      %1859 = vmatpush2.bf16.msra.mxu0 0
      %1860 = vmatprep.subr.bf16.mxu0 0
      %1861 = vmatpush2.bf16.msra.mxu0 0
      %1862 = vmatprep.mubr.bf16.mxu0 0
      %1863 = vmatmul.mubr.bf16.gmra.mxu0 %v1783
      %v1864 = vpop.f32.mrf.mxu0
      %v1865 = vadd.f32 %v1755, %v1864
      %v1866 = vpop.f32.mrf.mxu0
      %v1867 = vpop.f32.mrf.mxu0
      %v1868 = vadd.f32 %v1755, %v1867
      %v1869 = vpop.f32.mrf.mxu0
      %1870 = vmatprep.mubr.bf16.mxu0 0
      %1871 = vmatmul.mubr.bf16.gmra.mxu0 %v1786
      %v1872 = vpop.f32.mrf.mxu0
      %v1873 = vadd.f32 %v1755, %v1872
      %v1874 = vpop.f32.mrf.mxu0
      %v1875 = vpop.f32.mrf.mxu0
      %v1876 = vadd.f32 %v1755, %v1875
      %v1877 = vpop.f32.mrf.mxu0
      %1878 = vmatprep.mubr.bf16.mxu0 0
      %1879 = vmatmul.mubr.bf16.gmra.mxu0 %v1789
      %v1880 = vpop.f32.mrf.mxu0
      %v1881 = vadd.f32 %v1755, %v1880
      %v1882 = vpop.f32.mrf.mxu0
      %v1883 = vpop.f32.mrf.mxu0
      %v1884 = vadd.f32 %v1755, %v1883
      %v1885 = vpop.f32.mrf.mxu0
      %1886 = vmatprep.mubr.bf16.mxu0 0
      %1887 = vmatmul.mubr.bf16.gmra.mxu0 %v1792
      %v1888 = vpop.f32.mrf.mxu0
      %v1889 = vadd.f32 %v1755, %v1888
      %v1890 = vpop.f32.mrf.mxu0
      %v1891 = vpop.f32.mrf.mxu0
      %v1892 = vadd.f32 %v1755, %v1891
      %v1893 = vpop.f32.mrf.mxu0
      %1894 = vmatprep.mubr.bf16.mxu0 0
      %1895 = vmatmul.mubr.bf16.gmra.mxu0 %v1795
      %v1896 = vpop.f32.mrf.mxu0
      %v1897 = vadd.f32 %v1755, %v1896
      %v1898 = vpop.f32.mrf.mxu0
      %v1899 = vpop.f32.mrf.mxu0
      %v1900 = vadd.f32 %v1755, %v1899
      %v1901 = vpop.f32.mrf.mxu0
      %1902 = vmatprep.mubr.bf16.mxu0 0
      %1903 = vmatmul.mubr.bf16.gmra.mxu0 %v1798
      %v1904 = vpop.f32.mrf.mxu0
      %v1905 = vadd.f32 %v1755, %v1904
      %v1906 = vpop.f32.mrf.mxu0
      %v1907 = vpop.f32.mrf.mxu0
      %v1908 = vadd.f32 %v1755, %v1907
      %v1909 = vpop.f32.mrf.mxu0
      %1910 = vmatprep.mubr.bf16.mxu0 0
      %1911 = vmatmul.mubr.bf16.gmra.mxu0 %v1801
      %v1912 = vpop.f32.mrf.mxu0
      %v1913 = vadd.f32 %v1755, %v1912
      %v1914 = vpop.f32.mrf.mxu0
      %v1915 = vpop.f32.mrf.mxu0
      %v1916 = vadd.f32 %v1755, %v1915
      %v1917 = vpop.f32.mrf.mxu0
      %1918 = vmatprep.mubr.bf16.mxu0 0
      %1919 = vmatmul.mubr.bf16.gmra.mxu0 %v1804
      %v1920 = vpop.f32.mrf.mxu0
      %v1921 = vadd.f32 %v1755, %v1920
      %v1922 = vpop.f32.mrf.mxu0
      %v1923 = vpop.f32.mrf.mxu0
      %v1924 = vadd.f32 %v1755, %v1923
      %v1925 = vpop.f32.mrf.mxu0
      %1926 = vmatprep.mubr.bf16.mxu0 0
      %1927 = vmatmul.mubr.bf16.gmra.mxu0 %v1807
      %v1928 = vpop.f32.mrf.mxu0
      %v1929 = vadd.f32 %v1755, %v1928
      %v1930 = vpop.f32.mrf.mxu0
      %v1931 = vpop.f32.mrf.mxu0
      %v1932 = vadd.f32 %v1755, %v1931
      %v1933 = vpop.f32.mrf.mxu0
      %1934 = vmatprep.mubr.bf16.mxu0 0
      %1935 = vmatmul.mubr.bf16.gmra.mxu0 %v1810
      %v1936 = vpop.f32.mrf.mxu0
      %v1937 = vadd.f32 %v1755, %v1936
      %v1938 = vpop.f32.mrf.mxu0
      %v1939 = vpop.f32.mrf.mxu0
      %v1940 = vadd.f32 %v1755, %v1939
      %v1941 = vpop.f32.mrf.mxu0
      %1942 = vmatprep.mubr.bf16.mxu0 0
      %1943 = vmatmul.mubr.bf16.gmra.mxu0 %v1813
      %v1944 = vpop.f32.mrf.mxu0
      %v1945 = vadd.f32 %v1755, %v1944
      %v1946 = vpop.f32.mrf.mxu0
      %v1947 = vpop.f32.mrf.mxu0
      %v1948 = vadd.f32 %v1755, %v1947
      %v1949 = vpop.f32.mrf.mxu0
      %1950 = vmatprep.mubr.bf16.mxu0 0
      %1951 = vmatmul.mubr.bf16.gmra.mxu0 %v1816
      %v1952 = vpop.f32.mrf.mxu0
      %v1953 = vadd.f32 %v1755, %v1952
      %v1954 = vpop.f32.mrf.mxu0
      %v1955 = vpop.f32.mrf.mxu0
      %v1956 = vadd.f32 %v1755, %v1955
      %v1957 = vpop.f32.mrf.mxu0
      %1958 = vmatprep.mubr.bf16.mxu0 0
      %1959 = vmatmul.mubr.bf16.gmra.mxu0 %v1819
      %v1960 = vpop.f32.mrf.mxu0
      %v1961 = vadd.f32 %v1755, %v1960
      %v1962 = vpop.f32.mrf.mxu0
      %v1963 = vpop.f32.mrf.mxu0
      %v1964 = vadd.f32 %v1755, %v1963
      %v1965 = vpop.f32.mrf.mxu0
      %1966 = vmatprep.mubr.bf16.mxu0 0
      %1967 = vmatmul.mubr.bf16.gmra.mxu0 %v1822
      %v1968 = vpop.f32.mrf.mxu0
      %v1969 = vadd.f32 %v1755, %v1968
      %v1970 = vpop.f32.mrf.mxu0
      %v1971 = vpop.f32.mrf.mxu0
      %v1972 = vadd.f32 %v1755, %v1971
      %v1973 = vpop.f32.mrf.mxu0
      %1974 = vmatprep.mubr.bf16.mxu0 0
      %1975 = vmatmul.mubr.bf16.gmra.mxu0 %v1825
      %v1976 = vpop.f32.mrf.mxu0
      %v1977 = vadd.f32 %v1755, %v1976
      %v1978 = vpop.f32.mrf.mxu0
      %v1979 = vpop.f32.mrf.mxu0
      %v1980 = vadd.f32 %v1755, %v1979
      %v1981 = vpop.f32.mrf.mxu0
      %1982 = vmatprep.mubr.bf16.mxu0 0
      %1983 = vmatmul.mubr.bf16.gmra.mxu0 %v1828
      %v1984 = vpop.f32.mrf.mxu0
      %v1985 = vadd.f32 %v1755, %v1984
      %v1986 = vpop.f32.mrf.mxu0
      %v1987 = vpop.f32.mrf.mxu0
      %v1988 = vadd.f32 %v1755, %v1987
      %v1989 = vpop.f32.mrf.mxu0
      %1990 = vdwg.mxu0
      %v1991 = vmax.f32 %v1865, 0.0
      %v1992 = vmax.f32 %v1868, 0.0
      %v1993 = vmax.f32 %v1873, 0.0
      %v1994 = vmax.f32 %v1876, 0.0
      %v1995 = vmax.f32 %v1881, 0.0
      %v1996 = vmax.f32 %v1884, 0.0
      %v1997 = vmax.f32 %v1889, 0.0
      %v1998 = vmax.f32 %v1892, 0.0
      %v1999 = vmax.f32 %v1897, 0.0
      %v2000 = vmax.f32 %v1900, 0.0
      %v2001 = vmax.f32 %v1905, 0.0
      %v2002 = vmax.f32 %v1908, 0.0
      %v2003 = vmax.f32 %v1913, 0.0
      %v2004 = vmax.f32 %v1916, 0.0
      %v2005 = vmax.f32 %v1921, 0.0
      %v2006 = vmax.f32 %v1924, 0.0
      %v2007 = vmax.f32 %v1929, 0.0
      %v2008 = vmax.f32 %v1932, 0.0
      %v2009 = vmax.f32 %v1937, 0.0
      %v2010 = vmax.f32 %v1940, 0.0
      %v2011 = vmax.f32 %v1945, 0.0
      %v2012 = vmax.f32 %v1948, 0.0
      %v2013 = vmax.f32 %v1953, 0.0
      %v2014 = vmax.f32 %v1956, 0.0
      %v2015 = vmax.f32 %v1961, 0.0
      %v2016 = vmax.f32 %v1964, 0.0
      %v2017 = vmax.f32 %v1969, 0.0
      %v2018 = vmax.f32 %v1972, 0.0
      %v2019 = vmax.f32 %v1977, 0.0
      %v2020 = vmax.f32 %v1980, 0.0
      %v2021 = vmax.f32 %v1985, 0.0
      %v2022 = vmax.f32 %v1988, 0.0
      %v2023 = vld [vmem:[%s11] sm:$0x1]
      %v2025 = vlaneseq
      %v2026 = vshrl.u32 %v2025, 7
      %v2027 = vsub.s32 0, %v2026
      %v2028 = vrot.slane %v2023, %v2027
      %v2030 = vmul.f32 %v668, %v2028
      %v2031 = vmul.f32 %v669, %v2028
      %v2032 = vmul.f32 %v670, %v2028
      %v2033 = vmul.f32 %v671, %v2028
      %v2034 = vmul.f32 %v672, %v2028
      %v2035 = vmul.f32 %v673, %v2028
      %v2036 = vmul.f32 %v674, %v2028
      %v2037 = vmul.f32 %v675, %v2028
      %v2038 = vmul.f32 %v676, %v2028
      %v2039 = vmul.f32 %v677, %v2028
      %v2040 = vmul.f32 %v678, %v2028
      %v2041 = vmul.f32 %v679, %v2028
      %v2042 = vmul.f32 %v680, %v2028
      %v2043 = vmul.f32 %v681, %v2028
      %v2044 = vmul.f32 %v682, %v2028
      %v2045 = vmul.f32 %v683, %v2028
      %v2046 = vmul.f32 %v684, %v2028
      %v2047 = vmul.f32 %v685, %v2028
      %v2048 = vmul.f32 %v686, %v2028
      %v2049 = vmul.f32 %v687, %v2028
      %v2050 = vmul.f32 %v688, %v2028
      %v2051 = vmul.f32 %v689, %v2028
      %v2052 = vmul.f32 %v690, %v2028
      %v2053 = vmul.f32 %v691, %v2028
      %v2054 = vmul.f32 %v692, %v2028
      %v2055 = vmul.f32 %v693, %v2028
      %v2056 = vmul.f32 %v694, %v2028
      %v2057 = vmul.f32 %v695, %v2028
      %v2058 = vmul.f32 %v696, %v2028
      %v2059 = vmul.f32 %v697, %v2028
      %v2060 = vmul.f32 %v698, %v2028
      %v2061 = vmul.f32 %v699, %v2028
      %v2062 = vsel %vm864, %v2030, 0.0
      %2063 = vadd.xlane.f32.xlu0 %v2062
      %v2064 = vpop.xlane.xlu0 %2063
      %v2065 = vsel %vm864, %v2031, 0.0
      %2066 = vadd.xlane.f32.xlu0 %v2065
      %v2067 = vpop.xlane.xlu0 %2066
      %v2068 = vsel %vm864, %v2032, 0.0
      %2069 = vadd.xlane.f32.xlu0 %v2068
      %v2070 = vpop.xlane.xlu0 %2069
      %v2071 = vsel %vm864, %v2033, 0.0
      %2072 = vadd.xlane.f32.xlu0 %v2071
      %v2073 = vpop.xlane.xlu0 %2072
      %v2074 = vsel %vm864, %v2034, 0.0
      %2075 = vadd.xlane.f32.xlu0 %v2074
      %v2076 = vpop.xlane.xlu0 %2075
      %v2077 = vsel %vm864, %v2035, 0.0
      %2078 = vadd.xlane.f32.xlu0 %v2077
      %v2079 = vpop.xlane.xlu0 %2078
      %v2080 = vsel %vm864, %v2036, 0.0
      %2081 = vadd.xlane.f32.xlu0 %v2080
      %v2082 = vpop.xlane.xlu0 %2081
      %v2083 = vsel %vm864, %v2037, 0.0
      %2084 = vadd.xlane.f32.xlu0 %v2083
      %v2085 = vpop.xlane.xlu0 %2084
      %v2086 = vsel %vm864, %v2038, 0.0
      %2087 = vadd.xlane.f32.xlu0 %v2086
      %v2088 = vpop.xlane.xlu0 %2087
      %v2089 = vsel %vm864, %v2039, 0.0
      %2090 = vadd.xlane.f32.xlu0 %v2089
      %v2091 = vpop.xlane.xlu0 %2090
      %v2092 = vsel %vm864, %v2040, 0.0
      %2093 = vadd.xlane.f32.xlu0 %v2092
      %v2094 = vpop.xlane.xlu0 %2093
      %v2095 = vsel %vm864, %v2041, 0.0
      %2096 = vadd.xlane.f32.xlu0 %v2095
      %v2097 = vpop.xlane.xlu0 %2096
      %v2098 = vsel %vm864, %v2042, 0.0
      %2099 = vadd.xlane.f32.xlu0 %v2098
      %v2100 = vpop.xlane.xlu0 %2099
      %v2101 = vsel %vm864, %v2043, 0.0
      %2102 = vadd.xlane.f32.xlu0 %v2101
      %v2103 = vpop.xlane.xlu0 %2102
      %v2104 = vsel %vm864, %v2044, 0.0
      %2105 = vadd.xlane.f32.xlu0 %v2104
      %v2106 = vpop.xlane.xlu0 %2105
      %v2107 = vsel %vm864, %v2045, 0.0
      %2108 = vadd.xlane.f32.xlu0 %v2107
      %v2109 = vpop.xlane.xlu0 %2108
      %v2110 = vsel %vm864, %v2046, 0.0
      %2111 = vadd.xlane.f32.xlu0 %v2110
      %v2112 = vpop.xlane.xlu0 %2111
      %v2113 = vsel %vm864, %v2047, 0.0
      %2114 = vadd.xlane.f32.xlu0 %v2113
      %v2115 = vpop.xlane.xlu0 %2114
      %v2116 = vsel %vm864, %v2048, 0.0
      %2117 = vadd.xlane.f32.xlu0 %v2116
      %v2118 = vpop.xlane.xlu0 %2117
      %v2119 = vsel %vm864, %v2049, 0.0
      %2120 = vadd.xlane.f32.xlu0 %v2119
      %v2121 = vpop.xlane.xlu0 %2120
      %v2122 = vsel %vm864, %v2050, 0.0
      %2123 = vadd.xlane.f32.xlu0 %v2122
      %v2124 = vpop.xlane.xlu0 %2123
      %v2125 = vsel %vm864, %v2051, 0.0
      %2126 = vadd.xlane.f32.xlu0 %v2125
      %v2127 = vpop.xlane.xlu0 %2126
      %v2128 = vsel %vm864, %v2052, 0.0
      %2129 = vadd.xlane.f32.xlu0 %v2128
      %v2130 = vpop.xlane.xlu0 %2129
      %v2131 = vsel %vm864, %v2053, 0.0
      %2132 = vadd.xlane.f32.xlu0 %v2131
      %v2133 = vpop.xlane.xlu0 %2132
      %v2134 = vsel %vm864, %v2054, 0.0
      %2135 = vadd.xlane.f32.xlu0 %v2134
      %v2136 = vpop.xlane.xlu0 %2135
      %v2137 = vsel %vm864, %v2055, 0.0
      %2138 = vadd.xlane.f32.xlu0 %v2137
      %v2139 = vpop.xlane.xlu0 %2138
      %v2140 = vsel %vm864, %v2056, 0.0
      %2141 = vadd.xlane.f32.xlu0 %v2140
      %v2142 = vpop.xlane.xlu0 %2141
      %v2143 = vsel %vm864, %v2057, 0.0
      %2144 = vadd.xlane.f32.xlu0 %v2143
      %v2145 = vpop.xlane.xlu0 %2144
      %v2146 = vsel %vm864, %v2058, 0.0
      %2147 = vadd.xlane.f32.xlu0 %v2146
      %v2148 = vpop.xlane.xlu0 %2147
      %v2149 = vsel %vm864, %v2059, 0.0
      %2150 = vadd.xlane.f32.xlu0 %v2149
      %v2151 = vpop.xlane.xlu0 %2150
      %v2152 = vsel %vm864, %v2060, 0.0
      %2153 = vadd.xlane.f32.xlu0 %v2152
      %v2154 = vpop.xlane.xlu0 %2153
      %v2155 = vsel %vm864, %v2061, 0.0
      %2156 = vadd.xlane.f32.xlu0 %v2155
      %v2157 = vpop.xlane.xlu0 %2156
      %v2158 = vld [vmem:[%s12] sm:$0x1]
      %v2160 = vlaneseq
      %v2161 = vshrl.u32 %v2160, 7
      %v2162 = vsub.s32 0, %v2161
      %v2163 = vrot.slane %v2158, %v2162
      %v2165 = vmul.f32 %v1991, %v2163
      %v2166 = vmul.f32 %v1992, %v2163
      %v2167 = vmul.f32 %v1993, %v2163
      %v2168 = vmul.f32 %v1994, %v2163
      %v2169 = vmul.f32 %v1995, %v2163
      %v2170 = vmul.f32 %v1996, %v2163
      %v2171 = vmul.f32 %v1997, %v2163
      %v2172 = vmul.f32 %v1998, %v2163
      %v2173 = vmul.f32 %v1999, %v2163
      %v2174 = vmul.f32 %v2000, %v2163
      %v2175 = vmul.f32 %v2001, %v2163
      %v2176 = vmul.f32 %v2002, %v2163
      %v2177 = vmul.f32 %v2003, %v2163
      %v2178 = vmul.f32 %v2004, %v2163
      %v2179 = vmul.f32 %v2005, %v2163
      %v2180 = vmul.f32 %v2006, %v2163
      %v2181 = vmul.f32 %v2007, %v2163
      %v2182 = vmul.f32 %v2008, %v2163
      %v2183 = vmul.f32 %v2009, %v2163
      %v2184 = vmul.f32 %v2010, %v2163
      %v2185 = vmul.f32 %v2011, %v2163
      %v2186 = vmul.f32 %v2012, %v2163
      %v2187 = vmul.f32 %v2013, %v2163
      %v2188 = vmul.f32 %v2014, %v2163
      %v2189 = vmul.f32 %v2015, %v2163
      %v2190 = vmul.f32 %v2016, %v2163
      %v2191 = vmul.f32 %v2017, %v2163
      %v2192 = vmul.f32 %v2018, %v2163
      %v2193 = vmul.f32 %v2019, %v2163
      %v2194 = vmul.f32 %v2020, %v2163
      %v2195 = vmul.f32 %v2021, %v2163
      %v2196 = vmul.f32 %v2022, %v2163
      %v2197 = vsel %vm864, %v2165, 0.0
      %2198 = vadd.xlane.f32.xlu0 %v2197
      %v2199 = vpop.xlane.xlu0 %2198
      %v2200 = vsel %vm864, %v2166, 0.0
      %2201 = vadd.xlane.f32.xlu0 %v2200
      %v2202 = vpop.xlane.xlu0 %2201
      %v2203 = vsel %vm864, %v2167, 0.0
      %2204 = vadd.xlane.f32.xlu0 %v2203
      %v2205 = vpop.xlane.xlu0 %2204
      %v2206 = vsel %vm864, %v2168, 0.0
      %2207 = vadd.xlane.f32.xlu0 %v2206
      %v2208 = vpop.xlane.xlu0 %2207
      %v2209 = vsel %vm864, %v2169, 0.0
      %2210 = vadd.xlane.f32.xlu0 %v2209
      %v2211 = vpop.xlane.xlu0 %2210
      %v2212 = vsel %vm864, %v2170, 0.0
      %2213 = vadd.xlane.f32.xlu0 %v2212
      %v2214 = vpop.xlane.xlu0 %2213
      %v2215 = vsel %vm864, %v2171, 0.0
      %2216 = vadd.xlane.f32.xlu0 %v2215
      %v2217 = vpop.xlane.xlu0 %2216
      %v2218 = vsel %vm864, %v2172, 0.0
      %2219 = vadd.xlane.f32.xlu0 %v2218
      %v2220 = vpop.xlane.xlu0 %2219
      %v2221 = vsel %vm864, %v2173, 0.0
      %2222 = vadd.xlane.f32.xlu0 %v2221
      %v2223 = vpop.xlane.xlu0 %2222
      %v2224 = vsel %vm864, %v2174, 0.0
      %2225 = vadd.xlane.f32.xlu0 %v2224
      %v2226 = vpop.xlane.xlu0 %2225
      %v2227 = vsel %vm864, %v2175, 0.0
      %2228 = vadd.xlane.f32.xlu0 %v2227
      %v2229 = vpop.xlane.xlu0 %2228
      %v2230 = vsel %vm864, %v2176, 0.0
      %2231 = vadd.xlane.f32.xlu0 %v2230
      %v2232 = vpop.xlane.xlu0 %2231
      %v2233 = vsel %vm864, %v2177, 0.0
      %2234 = vadd.xlane.f32.xlu0 %v2233
      %v2235 = vpop.xlane.xlu0 %2234
      %v2236 = vsel %vm864, %v2178, 0.0
      %2237 = vadd.xlane.f32.xlu0 %v2236
      %v2238 = vpop.xlane.xlu0 %2237
      %v2239 = vsel %vm864, %v2179, 0.0
      %2240 = vadd.xlane.f32.xlu0 %v2239
      %v2241 = vpop.xlane.xlu0 %2240
      %v2242 = vsel %vm864, %v2180, 0.0
      %2243 = vadd.xlane.f32.xlu0 %v2242
      %v2244 = vpop.xlane.xlu0 %2243
      %v2245 = vsel %vm864, %v2181, 0.0
      %2246 = vadd.xlane.f32.xlu0 %v2245
      %v2247 = vpop.xlane.xlu0 %2246
      %v2248 = vsel %vm864, %v2182, 0.0
      %2249 = vadd.xlane.f32.xlu0 %v2248
      %v2250 = vpop.xlane.xlu0 %2249
      %v2251 = vsel %vm864, %v2183, 0.0
      %2252 = vadd.xlane.f32.xlu0 %v2251
      %v2253 = vpop.xlane.xlu0 %2252
      %v2254 = vsel %vm864, %v2184, 0.0
      %2255 = vadd.xlane.f32.xlu0 %v2254
      %v2256 = vpop.xlane.xlu0 %2255
      %v2257 = vsel %vm864, %v2185, 0.0
      %2258 = vadd.xlane.f32.xlu0 %v2257
      %v2259 = vpop.xlane.xlu0 %2258
      %v2260 = vsel %vm864, %v2186, 0.0
      %2261 = vadd.xlane.f32.xlu0 %v2260
      %v2262 = vpop.xlane.xlu0 %2261
      %v2263 = vsel %vm864, %v2187, 0.0
      %2264 = vadd.xlane.f32.xlu0 %v2263
      %v2265 = vpop.xlane.xlu0 %2264
      %v2266 = vsel %vm864, %v2188, 0.0
      %2267 = vadd.xlane.f32.xlu0 %v2266
      %v2268 = vpop.xlane.xlu0 %2267
      %v2269 = vsel %vm864, %v2189, 0.0
      %2270 = vadd.xlane.f32.xlu0 %v2269
      %v2271 = vpop.xlane.xlu0 %2270
      %v2272 = vsel %vm864, %v2190, 0.0
      %2273 = vadd.xlane.f32.xlu0 %v2272
      %v2274 = vpop.xlane.xlu0 %2273
      %v2275 = vsel %vm864, %v2191, 0.0
      %2276 = vadd.xlane.f32.xlu0 %v2275
      %v2277 = vpop.xlane.xlu0 %2276
      %v2278 = vsel %vm864, %v2192, 0.0
      %2279 = vadd.xlane.f32.xlu0 %v2278
      %v2280 = vpop.xlane.xlu0 %2279
      %v2281 = vsel %vm864, %v2193, 0.0
      %2282 = vadd.xlane.f32.xlu0 %v2281
      %v2283 = vpop.xlane.xlu0 %2282
      %v2284 = vsel %vm864, %v2194, 0.0
      %2285 = vadd.xlane.f32.xlu0 %v2284
      %v2286 = vpop.xlane.xlu0 %2285
      %v2287 = vsel %vm864, %v2195, 0.0
      %2288 = vadd.xlane.f32.xlu0 %v2287
      %v2289 = vpop.xlane.xlu0 %2288
      %v2290 = vsel %vm864, %v2196, 0.0
      %2291 = vadd.xlane.f32.xlu0 %v2290
      %v2292 = vpop.xlane.xlu0 %2291
      %v2293 = vadd.f32 %v2064, %v2199
      %v2294 = vadd.f32 %v2067, %v2202
      %v2295 = vadd.f32 %v2070, %v2205
      %v2296 = vadd.f32 %v2073, %v2208
      %v2297 = vadd.f32 %v2076, %v2211
      %v2298 = vadd.f32 %v2079, %v2214
      %v2299 = vadd.f32 %v2082, %v2217
      %v2300 = vadd.f32 %v2085, %v2220
      %v2301 = vadd.f32 %v2088, %v2223
      %v2302 = vadd.f32 %v2091, %v2226
      %v2303 = vadd.f32 %v2094, %v2229
      %v2304 = vadd.f32 %v2097, %v2232
      %v2305 = vadd.f32 %v2100, %v2235
      %v2306 = vadd.f32 %v2103, %v2238
      %v2307 = vadd.f32 %v2106, %v2241
      %v2308 = vadd.f32 %v2109, %v2244
      %v2309 = vadd.f32 %v2112, %v2247
      %v2310 = vadd.f32 %v2115, %v2250
      %v2311 = vadd.f32 %v2118, %v2253
      %v2312 = vadd.f32 %v2121, %v2256
      %v2313 = vadd.f32 %v2124, %v2259
      %v2314 = vadd.f32 %v2127, %v2262
      %v2315 = vadd.f32 %v2130, %v2265
      %v2316 = vadd.f32 %v2133, %v2268
      %v2317 = vadd.f32 %v2136, %v2271
      %v2318 = vadd.f32 %v2139, %v2274
      %v2319 = vadd.f32 %v2142, %v2277
      %v2320 = vadd.f32 %v2145, %v2280
      %v2321 = vadd.f32 %v2148, %v2283
      %v2322 = vadd.f32 %v2151, %v2286
      %v2323 = vadd.f32 %v2154, %v2289
      %v2324 = vadd.f32 %v2157, %v2292
      %v2325 = vld [vmem:[#allocation2] sm:$0x1]
      %v2327 = vlaneseq
      %v2328 = vshrl.u32 %v2327, 7
      %v2329 = vsub.s32 0, %v2328
      %v2330 = vrot.slane %v2325, %v2329
      %v2332 = vadd.f32 %v2293, %v2330
      %v2333 = vadd.f32 %v2294, %v2330
      %v2334 = vadd.f32 %v2295, %v2330
      %v2335 = vadd.f32 %v2296, %v2330
      %v2336 = vadd.f32 %v2297, %v2330
      %v2337 = vadd.f32 %v2298, %v2330
      %v2338 = vadd.f32 %v2299, %v2330
      %v2339 = vadd.f32 %v2300, %v2330
      %v2340 = vadd.f32 %v2301, %v2330
      %v2341 = vadd.f32 %v2302, %v2330
      %v2342 = vadd.f32 %v2303, %v2330
      %v2343 = vadd.f32 %v2304, %v2330
      %v2344 = vadd.f32 %v2305, %v2330
      %v2345 = vadd.f32 %v2306, %v2330
      %v2346 = vadd.f32 %v2307, %v2330
      %v2347 = vadd.f32 %v2308, %v2330
      %v2348 = vadd.f32 %v2309, %v2330
      %v2349 = vadd.f32 %v2310, %v2330
      %v2350 = vadd.f32 %v2311, %v2330
      %v2351 = vadd.f32 %v2312, %v2330
      %v2352 = vadd.f32 %v2313, %v2330
      %v2353 = vadd.f32 %v2314, %v2330
      %v2354 = vadd.f32 %v2315, %v2330
      %v2355 = vadd.f32 %v2316, %v2330
      %v2356 = vadd.f32 %v2317, %v2330
      %v2357 = vadd.f32 %v2318, %v2330
      %v2358 = vadd.f32 %v2319, %v2330
      %v2359 = vadd.f32 %v2320, %v2330
      %v2360 = vadd.f32 %v2321, %v2330
      %v2361 = vadd.f32 %v2322, %v2330
      %v2362 = vadd.f32 %v2323, %v2330
      %v2363 = vadd.f32 %v2324, %v2330
      %vm2364 = vcmask 7168
      %2365 = vst.msk [vmem:[%s537] sm:$0xff] %vm2364, %v2332
      %2366 = vst.msk [vmem:[%s537 + $0x8] sm:$0xff] %vm2364, %v2333
      %2367 = vst.msk [vmem:[%s537 + $0x10] sm:$0xff] %vm2364, %v2334
      %2368 = vst.msk [vmem:[%s537 + $0x18] sm:$0xff] %vm2364, %v2335
      %2369 = vst.msk [vmem:[%s537 + $0x20] sm:$0xff] %vm2364, %v2336
      %2370 = vst.msk [vmem:[%s537 + $0x28] sm:$0xff] %vm2364, %v2337
      %2371 = vst.msk [vmem:[%s537 + $0x30] sm:$0xff] %vm2364, %v2338
      %2372 = vst.msk [vmem:[%s537 + $0x38] sm:$0xff] %vm2364, %v2339
      %2373 = vst.msk [vmem:[%s537 + $0x40] sm:$0xff] %vm2364, %v2340
      %2374 = vst.msk [vmem:[%s537 + $0x48] sm:$0xff] %vm2364, %v2341
      %2375 = vst.msk [vmem:[%s537 + $0x50] sm:$0xff] %vm2364, %v2342
      %2376 = vst.msk [vmem:[%s537 + $0x58] sm:$0xff] %vm2364, %v2343
      %2377 = vst.msk [vmem:[%s537 + $0x60] sm:$0xff] %vm2364, %v2344
      %2378 = vst.msk [vmem:[%s537 + $0x68] sm:$0xff] %vm2364, %v2345
      %2379 = vst.msk [vmem:[%s537 + $0x70] sm:$0xff] %vm2364, %v2346
      %2380 = vst.msk [vmem:[%s537 + $0x78] sm:$0xff] %vm2364, %v2347
      %2381 = vst.msk [vmem:[%s537 + $0x80] sm:$0xff] %vm2364, %v2348
      %2382 = vst.msk [vmem:[%s537 + $0x88] sm:$0xff] %vm2364, %v2349
      %2383 = vst.msk [vmem:[%s537 + $0x90] sm:$0xff] %vm2364, %v2350
      %2384 = vst.msk [vmem:[%s537 + $0x98] sm:$0xff] %vm2364, %v2351
      %2385 = vst.msk [vmem:[%s537 + $0xa0] sm:$0xff] %vm2364, %v2352
      %2386 = vst.msk [vmem:[%s537 + $0xa8] sm:$0xff] %vm2364, %v2353
      %2387 = vst.msk [vmem:[%s537 + $0xb0] sm:$0xff] %vm2364, %v2354
      %2388 = vst.msk [vmem:[%s537 + $0xb8] sm:$0xff] %vm2364, %v2355
      %2389 = vst.msk [vmem:[%s537 + $0xc0] sm:$0xff] %vm2364, %v2356
      %2390 = vst.msk [vmem:[%s537 + $0xc8] sm:$0xff] %vm2364, %v2357
      %2391 = vst.msk [vmem:[%s537 + $0xd0] sm:$0xff] %vm2364, %v2358
      %2392 = vst.msk [vmem:[%s537 + $0xd8] sm:$0xff] %vm2364, %v2359
      %2393 = vst.msk [vmem:[%s537 + $0xe0] sm:$0xff] %vm2364, %v2360
      %2394 = vst.msk [vmem:[%s537 + $0xe8] sm:$0xff] %vm2364, %v2361
      %2395 = vst.msk [vmem:[%s537 + $0xf0] sm:$0xff] %vm2364, %v2362
      %2396 = vst.msk [vmem:[%s537 + $0xf8] sm:$0xff] %vm2364, %v2363
      %s2397 = smul.u32 32, %s27
      %p2398 = scmp.lt.s32.totalorder %s2397, 63
      %s2399 = scalar_select %p2398, %s2397, 63
      %s2400 = smul.addr %s2399, 8
      %s2401 = scalar_lea.vmem %s14, %s2400
      // Predicated region
      $region77: #{tpu_custom_call.1} parent=75 // pred_check
        %p2402 = pneg %p359
      $region78: #{tpu_custom_call.1} parent=75 // pred_check_branch
        %2404 = sbr.rel (%p2402) target = $region80
      $region79: #{tpu_custom_call.1} parent=75 // pred_region
        %s2405 = smul.u32 32, %s27
      $region80: #{tpu_custom_call.1} parent=75 // pred_fallthru
        _
    $region76: #{tpu_custom_call.1} parent=5 // pred_fallthru
      _
    %p2406 = scmp.le.s32.totalorder 2, %s22
    // Predicated region
    $region81: #{tpu_custom_call.1} parent=5 // pred_check
      %p2407 = pneg %p2406
    $region82: #{tpu_custom_call.1} parent=5 // pred_check_branch
      %2409 = sbr.rel (%p2407) target = $region84
    $region83: #{tpu_custom_call.1} parent=5 // pred_region
      %s2410 = ssub.s32 %s22, 2
      // Predicated region
      $region85: #{tpu_custom_call.1} parent=83 // pred_check
        %p2411 = pneg %p365
      $region86: #{tpu_custom_call.1} parent=83 // pred_check_branch
        %2413 = sbr.rel (%p2411) target = $region88
      $region87: #{tpu_custom_call.1} parent=83 // pred_region
        %s2414 = smul.u32 32, %s28
        %p2415 = scmp.lt.s32.totalorder %s2414, 63
        %s2416 = scalar_select %p2415, %s2414, 63
        %s2417 = smul.addr %s2416, 8
        %s2418 = scalar_lea.vmem %s14, %s2417
      $region88: #{tpu_custom_call.1} parent=83 // pred_fallthru
        _
    $region84: #{tpu_custom_call.1} parent=5 // pred_fallthru
      _
  $region6: #{tpu_custom_call.1} parent=0 // loop_footer
    %s26 = sadd.s32 1, %s22
  $region7: #{tpu_custom_call.1} parent=0 // loop_footer_branch
    %21 = sbr.rel target = $region3
  $region8: #{tpu_custom_call.1} parent=0 // loop_exit
    _

</llo_original>
